<compile_context>
chip_gen: v6e
topology: v6e:2x2x1
jax: 0.10.0
libtpu: 0.0.40
codegen_flags: <defaults>
</compile_context>

<pallas_src>
import functools

import jax
import jax.numpy as jnp
from jax.experimental import pallas as pl
from jax.experimental.pallas import tpu as pltpu

EPS = 1e-5
_TN_TARGET = 1024  # target points per tile (multiple of 8, divides N)


def _choose_point_tile(n, target):
    """Largest multiple-of-8 divisor of n that is <= target; else n itself."""
    target = max(8, min(n, target))
    best = None
    for t in range(8, target + 1, 8):
        if n % t == 0:
            best = t
    return best if best is not None else n


def _vmem_capacity_bytes(default=64 * 2**20):
    """Generation-aware physical VMEM capacity (64 MiB v7x, 128 MiB v5e/v6e)."""
    try:
        cap = int(pltpu.get_tpu_info().vmem_capacity_bytes)
        if cap > 0:
            return cap
    except Exception:
        pass
    return default


def _make_kernel(m_total: int, batch: int):
    """Build the kernel with static total point count (B*N) and batch size."""
    inv_cnt = 1.0 / float(m_total)

    def kernel(x_ref,
               w1_ref, g1_ref, bt1_ref,
               w2_ref, g2_ref, bt2_ref,
               w3_ref, g3_ref, bt3_ref,
               out_ref,
               s1, q1, s2, q2, s3, q3, mx3, mn3):
        # x_ref : [1, TN, 12] bf16     (one sample's tile of points)
        # wK    : [Cin, Cout] bf16     (VMEM-resident, constant index_map)
        # gK/btK: [1, Cout]   f32
        # out   : [B, Cout3]  f32      (resident accumulator, written at the end)
        # sK/qK : [1, Cout]   f32      per-channel sum / sum-of-squares
        # mx3/mn3: [B, 1, Cout3] f32   per-sample running max / min of raw conv3
        p = pl.program_id(0)   # pass index: 0 stats1, 1 stats2, 2 stats3+extrema
        b = pl.program_id(1)   # sample index
        n = pl.program_id(2)   # point-tile index

        @pl.when(jnp.logical_and(p == 0, jnp.logical_and(b == 0, n == 0)))
        def _init():
            s1[...] = jnp.zeros_like(s1)
            q1[...] = jnp.zeros_like(q1)
            s2[...] = jnp.zeros_like(s2)
            q2[...] = jnp.zeros_like(q2)
            s3[...] = jnp.zeros_like(s3)
            q3[...] = jnp.zeros_like(q3)
            mx3[...] = jnp.full_like(mx3, -jnp.inf)
            mn3[...] = jnp.full_like(mn3, jnp.inf)

        x = x_ref[0]                                        # [TN, 12] bf16

        def scale_shift(s_ref, q_ref, g_ref, bt_ref):
            # Training-mode BN folded into y = z*scale + shift (f32 throughout).
            mean = s_ref[...] * inv_cnt
            var = jnp.maximum(q_ref[...] * inv_cnt - mean * mean, 0.0)
            scale = jax.lax.rsqrt(var + EPS) * g_ref[...]
            shift = bt_ref[...] - mean * scale
            return scale, shift                             # [1, C] each

        def accum_stats(z, s_ref, q_ref):
            s_ref[...] += jnp.sum(z, axis=0, keepdims=True)
            q_ref[...] += jnp.sum(z * z, axis=0, keepdims=True)

        def fold(w_ref, scale):
            # Fold the per-output-channel BN scale into the weight columns
            # (tiny [Cin,Cout] op) so the apply epilogue is only +shift, relu.
            return (w_ref[...].astype(jnp.float32) * scale).astype(jnp.bfloat16)

        def layer1(sc1, sh1):
            h = jnp.dot(x, fold(w1_ref, sc1),
                        preferred_element_type=jnp.float32) + sh1
            return jnp.maximum(h, 0.0).astype(jnp.bfloat16)  # [TN, 64]

        def layer2(h1, sc2, sh2):
            h = jnp.dot(h1, fold(w2_ref, sc2),
                        preferred_element_type=jnp.float32) + sh2
            return jnp.maximum(h, 0.0).astype(jnp.bfloat16)  # [TN, 128]

        @pl.when(p == 0)
        def _stats1():
            z1 = jnp.dot(x, w1_ref[...], preferred_element_type=jnp.float32)
            accum_stats(z1, s1, q1)

        @pl.when(p == 1)
        def _stats2():
            sc1, sh1 = scale_shift(s1, q1, g1_ref, bt1_ref)
            h1 = layer1(sc1, sh1)
            z2 = jnp.dot(h1, w2_ref[...], preferred_element_type=jnp.float32)
            accum_stats(z2, s2, q2)

        @pl.when(p == 2)
        def _stats3_and_extrema():
            sc1, sh1 = scale_shift(s1, q1, g1_ref, bt1_ref)
            sc2, sh2 = scale_shift(s2, q2, g2_ref, bt2_ref)
            h1 = layer1(sc1, sh1)
            h2 = layer2(h1, sc2, sh2)
            z3 = jnp.dot(h2, w3_ref[...],
                         preferred_element_type=jnp.float32)  # [TN, out_dim]
            accum_stats(z3, s3, q3)
            # Per-sample running extrema of the RAW conv3 output (BN3 + max
            # is deferred via the monotone-affine trick; h3 never exists).
            mx3[b] = jnp.maximum(mx3[b], jnp.max(z3, axis=0, keepdims=True))
            mn3[b] = jnp.minimum(mn3[b], jnp.min(z3, axis=0, keepdims=True))

            is_last = jnp.logical_and(b == pl.num_programs(1) - 1,
                                      n == pl.num_programs(2) - 1)

            @pl.when(is_last)
            def _finalize():
                sc3, sh3 = scale_shift(s3, q3, g3_ref, bt3_ref)   # [1, out_dim]
                rows = [jnp.where(sc3 >= 0.0, mx3[i], mn3[i])     # [1, out_dim]
                        for i in range(batch)]                    # static unroll
                ext = jnp.concatenate(rows, axis=0)               # [B, out_dim]
                out_ref[...] = ext * sc3 + sh3                    # single store

    return kernel


def init_params(key, output_dim=256):
    """Deterministic synthetic parameters with the module's shapes.

    PyTorch shapes: convK.weight [Cout, Cin, 1] (stored here as [Cout, Cin]),
    convK.bias [Cout]; bnK.weight / bnK.bias stored as [1, Cout]. The conv
    bias is used only by the pure-JAX reference -- the kernel omits it because
    it cancels exactly under training-mode BatchNorm.
    """
    dims = [(12, 64), (64, 128), (128, output_dim)]
    params = {}
    keys = jax.random.split(key, 4 * len(dims))
    for i, (cin, cout) in enumerate(dims):
        kw, kb, kg, kbt = keys[4 * i:4 * i + 4]
        params[f"w{i+1}"] = (jax.random.normal(kw, (cout, cin), jnp.float32)
                             / jnp.sqrt(jnp.float32(cin)))
        params[f"b{i+1}"] = 0.1 * jax.random.normal(kb, (cout,), jnp.float32)
        params[f"g{i+1}"] = 1.0 + 0.1 * jax.random.normal(kg, (1, cout), jnp.float32)
        params[f"bt{i+1}"] = 0.1 * jax.random.normal(kbt, (1, cout), jnp.float32)
    return params


@functools.partial(jax.jit, static_argnames=("point_tile",))
def pointnet_feat_two_stream(point_set1, point_set2, params,
                             point_tile=_TN_TARGET):
    """point_setK: [B, 6, N] (NCL, like PyTorch). Returns [B, output_dim]."""
    x = jnp.concatenate([point_set1, point_set2], axis=1)        # [B, 12, N]
    B, c_in, N = x.shape
    out_dim = params["w3"].shape[0]

    # Points on sublanes, channels lane-dense, pre-cast to bf16 (halves the
    # DMA of the lane-padded [., 12] slab; the matmul runs in bf16 anyway).
    x_bnc = jnp.transpose(x, (0, 2, 1)).astype(jnp.bfloat16)     # [B, N, 12]

    TN = _choose_point_tile(N, point_tile)
    n_tiles = N // TN
    grid = (3, B, n_tiles)                                       # pass outermost

    args = (
        x_bnc,
        params["w1"].T.astype(jnp.bfloat16), params["g1"], params["bt1"],
        params["w2"].T.astype(jnp.bfloat16), params["g2"], params["bt2"],
        params["w3"].T.astype(jnp.bfloat16), params["g3"], params["bt3"],
    )

    const2 = lambda p, b, n: (0, 0)                 # VMEM-resident params
    in_specs = [
        pl.BlockSpec((1, TN, c_in), lambda p, b, n: (b, n, 0)),
        pl.BlockSpec((c_in, 64), const2),
        pl.BlockSpec((1, 64), const2), pl.BlockSpec((1, 64), const2),
        pl.BlockSpec((64, 128), const2),
        pl.BlockSpec((1, 128), const2), pl.BlockSpec((1, 128), const2),
        pl.BlockSpec((128, out_dim), const2),
        pl.BlockSpec((1, out_dim), const2), pl.BlockSpec((1, out_dim), const2),
    ]
    out_spec = pl.BlockSpec((B, out_dim), const2)   # resident accumulator

    scratch = [
        pltpu.VMEM((1, 64), jnp.float32), pltpu.VMEM((1, 64), jnp.float32),
        pltpu.VMEM((1, 128), jnp.float32), pltpu.VMEM((1, 128), jnp.float32),
        pltpu.VMEM((1, out_dim), jnp.float32), pltpu.VMEM((1, out_dim), jnp.float32),
        pltpu.VMEM((B, 1, out_dim), jnp.float32),   # per-sample max of raw z3
        pltpu.VMEM((B, 1, out_dim), jnp.float32),   # per-sample min of raw z3
    ]

    # Generation-aware VMEM limit: never exceed the chip's physical capacity
    # (64 MiB on v7x); size from the actually-resident buffers with headroom.
    cap = _vmem_capacity_bytes()
    est = (2 * 2 * TN * 128                                     # 2x bf16 x tile (lane-padded)
           + 2 * (128 * 64 + 64 * 128 + 128 * out_dim)          # bf16 weights
           + 3 * 4 * TN * (64 + 128 + out_dim)                  # f32 per-tile temps + slack
           + 4 * out_dim * (3 * B + 8))                         # extrema + out + stats
    vmem_limit = int(min(cap - 8 * 2**20, max(32 * 2**20, 2 * est)))
    vmem_limit = max(vmem_limit, 16 * 2**20)

    # Advisory cost estimate (3 passes: layer1 x3, layer2 x2, layer3 x1).
    macs = B * N * (3 * c_in * 64 + 2 * 64 * 128 + 128 * out_dim)
    bytes_accessed = (3 * 2 * B * N * c_in
                      + 2 * (c_in * 64 + 64 * 128 + 128 * out_dim)
                      + 4 * 2 * (64 + 128 + out_dim)
                      + 4 * B * out_dim)

    kernel = _make_kernel(m_total=B * N, batch=B)

    return pl.pallas_call(
        kernel,
        out_shape=jax.ShapeDtypeStruct((B, out_dim), jnp.float32),
        grid_spec=pltpu.PrefetchScalarGridSpec(
            num_scalar_prefetch=0,
            grid=grid,
            in_specs=in_specs,
            out_specs=out_spec,
            scratch_shapes=scratch),
        compiler_params=pltpu.CompilerParams(
            # All axes share accumulators -> sequential ("arbitrary").
            dimension_semantics=("arbitrary", "arbitrary", "arbitrary"),
            vmem_limit_bytes=vmem_limit),
        cost_estimate=pl.CostEstimate(
            flops=2 * macs,
            transcendentals=3 * (64 + 128 + out_dim),
            bytes_accessed=bytes_accessed),
    )(*args)


def reference_forward(point_set1, point_set2, params):
    """Pure-JAX f32 reference mirroring the PyTorch module (training-mode BN,
    including the Conv1d bias that the kernel provably drops)."""
    x = jnp.concatenate([point_set1, point_set2], axis=1)        # [B, 12, N]

    def conv_bn(h, w, b, g, bt, relu):
        h = jnp.einsum("oc,bcn->bon", w, h) + b.reshape(1, -1, 1)
        mean = jnp.mean(h, axis=(0, 2), keepdims=True)
        var = jnp.mean((h - mean) ** 2, axis=(0, 2), keepdims=True)
        h = (h - mean) / jnp.sqrt(var + EPS)
        h = h * g.reshape(1, -1, 1) + bt.reshape(1, -1, 1)
        return jnp.maximum(h, 0.0) if relu else h

    h = conv_bn(x, params["w1"], params["b1"], params["g1"], params["bt1"], True)
    h = conv_bn(h, params["w2"], params["b2"], params["g2"], params["bt2"], True)
    h = conv_bn(h, params["w3"], params["b3"], params["g3"], params["bt3"], False)
    return jnp.max(h, axis=2)                                    # [B, out_dim]


if __name__ == "__main__":
    key = jax.random.PRNGKey(0)
    k1, k2, kp = jax.random.split(key, 3)

    B, C_STREAM, N = 2, 6, 512          # cat -> 12 input channels (Conv1d(12, 64, 1))
    OUTPUT_DIM = 256                    # small stand-in for the default 1024

    point_set1 = jax.random.normal(k1, (B, C_STREAM, N), jnp.float32)
    point_set2 = jax.random.normal(k2, (B, C_STREAM, N), jnp.float32)
    params = init_params(kp, output_dim=OUTPUT_DIM)

    # point_tile=128 -> grid (3 passes, 2 samples, 4 point tiles): exercises
    # the cross-tile stats accumulators and the per-sample running extrema.
    out = jax.block_until_ready(
        pointnet_feat_two_stream(point_set1, point_set2, params, point_tile=128))
    assert out.shape == (B, OUTPUT_DIM), out.shape

    ref = jax.block_until_ready(reference_forward(point_set1, point_set2, params))
    # bf16 MXU operands / bf16 input vs. the pure-f32 reference -> moderate tol.
    max_err = float(jnp.max(jnp.abs(out - ref)))
    assert jnp.allclose(out, ref, atol=5e-2, rtol=5e-2), max_err

    print("KERNEL_OK")
</pallas_src>

<mosaic_0001>
module attributes {stable_mosaic.version = 11 : i64} {
  func.func @kernel(%arg0: i32, %arg1: i32, %arg2: i32, %arg3: memref<1x128x12xbf16, #tpu.memory_space<vmem>>, %arg4: memref<12x64xbf16, #tpu.memory_space<vmem>>, %arg5: memref<1x64xf32, #tpu.memory_space<vmem>>, %arg6: memref<1x64xf32, #tpu.memory_space<vmem>>, %arg7: memref<64x128xbf16, #tpu.memory_space<vmem>>, %arg8: memref<1x128xf32, #tpu.memory_space<vmem>>, %arg9: memref<1x128xf32, #tpu.memory_space<vmem>>, %arg10: memref<128x256xbf16, #tpu.memory_space<vmem>>, %arg11: memref<1x256xf32, #tpu.memory_space<vmem>>, %arg12: memref<1x256xf32, #tpu.memory_space<vmem>>, %arg13: memref<2x256xf32, #tpu.memory_space<vmem>>, %arg14: memref<1x64xf32, #tpu.memory_space<vmem>>, %arg15: memref<1x64xf32, #tpu.memory_space<vmem>>, %arg16: memref<1x128xf32, #tpu.memory_space<vmem>>, %arg17: memref<1x128xf32, #tpu.memory_space<vmem>>, %arg18: memref<1x256xf32, #tpu.memory_space<vmem>>, %arg19: memref<1x256xf32, #tpu.memory_space<vmem>>, %arg20: memref<2x1x256xf32, #tpu.memory_space<vmem>>, %arg21: memref<2x1x256xf32, #tpu.memory_space<vmem>>) attributes {dimension_semantics = [#tpu.dimension_semantics<arbitrary>, #tpu.dimension_semantics<arbitrary>, #tpu.dimension_semantics<arbitrary>], iteration_bounds = array<i64: 3, 2, 4>, scalar_prefetch = 0 : i64, scratch_operands = 8 : i64, tpu.core_type = #tpu.core_type<tc>, window_params = [{transform_indices = @transform_0, window_bounds = array<i64: 1, 128, 12>}, {pipeline_mode = #tpu.pipeline_mode<synchronous>, transform_indices = @transform_1, window_bounds = array<i64: 12, 64>}, {pipeline_mode = #tpu.pipeline_mode<synchronous>, transform_indices = @transform_2, window_bounds = array<i64: 1, 64>}, {pipeline_mode = #tpu.pipeline_mode<synchronous>, transform_indices = @transform_3, window_bounds = array<i64: 1, 64>}, {pipeline_mode = #tpu.pipeline_mode<synchronous>, transform_indices = @transform_4, window_bounds = array<i64: 64, 128>}, {pipeline_mode = #tpu.pipeline_mode<synchronous>, transform_indices = @transform_5, window_bounds = array<i64: 1, 128>}, {pipeline_mode = #tpu.pipeline_mode<synchronous>, transform_indices = @transform_6, window_bounds = array<i64: 1, 128>}, {pipeline_mode = #tpu.pipeline_mode<synchronous>, transform_indices = @transform_7, window_bounds = array<i64: 128, 256>}, {pipeline_mode = #tpu.pipeline_mode<synchronous>, transform_indices = @transform_8, window_bounds = array<i64: 1, 256>}, {pipeline_mode = #tpu.pipeline_mode<synchronous>, transform_indices = @transform_9, window_bounds = array<i64: 1, 256>}, {pipeline_mode = #tpu.pipeline_mode<synchronous>, transform_indices = @transform_10, window_bounds = array<i64: 2, 256>}]} {
    %c0_i32 = arith.constant 0 : i32
    %0 = arith.cmpi eq, %arg0, %c0_i32 : i32
    %c0_i32_0 = arith.constant 0 : i32
    %1 = arith.cmpi eq, %arg1, %c0_i32_0 : i32
    %c0_i32_1 = arith.constant 0 : i32
    %2 = arith.cmpi eq, %arg2, %c0_i32_1 : i32
    %3 = arith.andi %1, %2 : i1
    %4 = arith.andi %0, %3 : i1
    %5 = arith.extui %4 : i1 to i32
    %c0_i32_2 = arith.constant 0 : i32
    %6 = arith.cmpi ne, %5, %c0_i32_2 : i32
    scf.if %6 {
      %cst = arith.constant 0.000000e+00 : f32
      %18 = vector.broadcast %cst : f32 to vector<1x64xf32>
      %c0_9 = arith.constant 0 : index
      %c0_10 = arith.constant 0 : index
      %19 = vector.load %arg14[%c0_9, %c0_10] : memref<1x64xf32, #tpu.memory_space<vmem>>, vector<1x64xf32>
      tpu.vector_store %arg14[%c0_9, %c0_10], %18 {strides = array<i32>} : memref<1x64xf32, #tpu.memory_space<vmem>>, vector<1x64xf32>,
      %cst_11 = arith.constant 0.000000e+00 : f32
      %20 = vector.broadcast %cst_11 : f32 to vector<1x64xf32>
      %c0_12 = arith.constant 0 : index
      %c0_13 = arith.constant 0 : index
      %21 = vector.load %arg15[%c0_12, %c0_13] : memref<1x64xf32, #tpu.memory_space<vmem>>, vector<1x64xf32>
      tpu.vector_store %arg15[%c0_12, %c0_13], %20 {strides = array<i32>} : memref<1x64xf32, #tpu.memory_space<vmem>>, vector<1x64xf32>,
      %cst_14 = arith.constant 0.000000e+00 : f32
      %22 = vector.broadcast %cst_14 : f32 to vector<1x128xf32>
      %c0_15 = arith.constant 0 : index
      %c0_16 = arith.constant 0 : index
      %23 = vector.load %arg16[%c0_15, %c0_16] : memref<1x128xf32, #tpu.memory_space<vmem>>, vector<1x128xf32>
      tpu.vector_store %arg16[%c0_15, %c0_16], %22 {strides = array<i32>} : memref<1x128xf32, #tpu.memory_space<vmem>>, vector<1x128xf32>,
      %cst_17 = arith.constant 0.000000e+00 : f32
      %24 = vector.broadcast %cst_17 : f32 to vector<1x128xf32>
      %c0_18 = arith.constant 0 : index
      %c0_19 = arith.constant 0 : index
      %25 = vector.load %arg17[%c0_18, %c0_19] : memref<1x128xf32, #tpu.memory_space<vmem>>, vector<1x128xf32>
      tpu.vector_store %arg17[%c0_18, %c0_19], %24 {strides = array<i32>} : memref<1x128xf32, #tpu.memory_space<vmem>>, vector<1x128xf32>,
      %cst_20 = arith.constant 0.000000e+00 : f32
      %26 = vector.broadcast %cst_20 : f32 to vector<1x256xf32>
      %c0_21 = arith.constant 0 : index
      %c0_22 = arith.constant 0 : index
      %27 = vector.load %arg18[%c0_21, %c0_22] : memref<1x256xf32, #tpu.memory_space<vmem>>, vector<1x256xf32>
      tpu.vector_store %arg18[%c0_21, %c0_22], %26 {strides = array<i32>} : memref<1x256xf32, #tpu.memory_space<vmem>>, vector<1x256xf32>,
      %cst_23 = arith.constant 0.000000e+00 : f32
      %28 = vector.broadcast %cst_23 : f32 to vector<1x256xf32>
      %c0_24 = arith.constant 0 : index
      %c0_25 = arith.constant 0 : index
      %29 = vector.load %arg19[%c0_24, %c0_25] : memref<1x256xf32, #tpu.memory_space<vmem>>, vector<1x256xf32>
      tpu.vector_store %arg19[%c0_24, %c0_25], %28 {strides = array<i32>} : memref<1x256xf32, #tpu.memory_space<vmem>>, vector<1x256xf32>,
      %cst_26 = arith.constant 0xFF800000 : f32
      %30 = vector.broadcast %cst_26 : f32 to vector<2x1x256xf32>
      %c0_27 = arith.constant 0 : index
      %c0_28 = arith.constant 0 : index
      %c0_29 = arith.constant 0 : index
      %31 = vector.load %arg20[%c0_27, %c0_28, %c0_29] : memref<2x1x256xf32, #tpu.memory_space<vmem>>, vector<2x1x256xf32>
      tpu.vector_store %arg20[%c0_27, %c0_28, %c0_29], %30 {strides = array<i32>} : memref<2x1x256xf32, #tpu.memory_space<vmem>>, vector<2x1x256xf32>,
      %cst_30 = arith.constant 0x7F800000 : f32
      %32 = vector.broadcast %cst_30 : f32 to vector<2x1x256xf32>
      %c0_31 = arith.constant 0 : index
      %c0_32 = arith.constant 0 : index
      %c0_33 = arith.constant 0 : index
      %33 = vector.load %arg21[%c0_31, %c0_32, %c0_33] : memref<2x1x256xf32, #tpu.memory_space<vmem>>, vector<2x1x256xf32>
      tpu.vector_store %arg21[%c0_31, %c0_32, %c0_33], %32 {strides = array<i32>} : memref<2x1x256xf32, #tpu.memory_space<vmem>>, vector<2x1x256xf32>,
    } else {
    }
    %c0 = arith.constant 0 : index
    %c0_3 = arith.constant 0 : index
    %c0_4 = arith.constant 0 : index
    %7 = vector.load %arg3[%c0, %c0_3, %c0_4] : memref<1x128x12xbf16, #tpu.memory_space<vmem>>, vector<1x128x12xbf16>
    %8 = vector.shape_cast %7 : vector<1x128x12xbf16> to vector<128x12xbf16>
    %c0_i32_5 = arith.constant 0 : i32
    %9 = arith.cmpi eq, %arg0, %c0_i32_5 : i32
    %10 = arith.extui %9 : i1 to i32
    %c0_i32_6 = arith.constant 0 : i32
    %11 = arith.cmpi ne, %10, %c0_i32_6 : i32
    scf.if %11 {
      %c0_9 = arith.constant 0 : index
      %c0_10 = arith.constant 0 : index
      %18 = vector.load %arg4[%c0_9, %c0_10] : memref<12x64xbf16, #tpu.memory_space<vmem>>, vector<12x64xbf16>
      %cst = arith.constant dense<0.000000e+00> : vector<128x64xf32>
      %19 = tpu.matmul %8, %18, %cst {dimension_numbers = #tpu.dot_dimension_numbers<[1], [0], [0], [1], [0, 0, 1, 1], [], []>} : vector<128x12xbf16>, vector<12x64xbf16>, vector<128x64xf32> -> vector<128x64xf32>
      %c0_11 = arith.constant 0 : index
      %c0_12 = arith.constant 0 : index
      %20 = vector.load %arg14[%c0_11, %c0_12] : memref<1x64xf32, #tpu.memory_space<vmem>>, vector<1x64xf32>
      %cst_13 = arith.constant dense<0.000000e+00> : vector<64xf32>
      %21 = vector.multi_reduction <add>, %19, %cst_13 [0] : vector<128x64xf32> to vector<64xf32>
      %22 = vector.shape_cast %21 : vector<64xf32> to vector<1x64xf32>
      %23 = arith.addf %20, %22 : vector<1x64xf32>
      %c0_14 = arith.constant 0 : index
      %c0_15 = arith.constant 0 : index
      %24 = vector.load %arg14[%c0_14, %c0_15] : memref<1x64xf32, #tpu.memory_space<vmem>>, vector<1x64xf32>
      tpu.vector_store %arg14[%c0_14, %c0_15], %23 {strides = array<i32>} : memref<1x64xf32, #tpu.memory_space<vmem>>, vector<1x64xf32>,
      %c0_16 = arith.constant 0 : index
      %c0_17 = arith.constant 0 : index
      %25 = vector.load %arg15[%c0_16, %c0_17] : memref<1x64xf32, #tpu.memory_space<vmem>>, vector<1x64xf32>
      %26 = arith.mulf %19, %19 : vector<128x64xf32>
      %cst_18 = arith.constant dense<0.000000e+00> : vector<64xf32>
      %27 = vector.multi_reduction <add>, %26, %cst_18 [0] : vector<128x64xf32> to vector<64xf32>
      %28 = vector.shape_cast %27 : vector<64xf32> to vector<1x64xf32>
      %29 = arith.addf %25, %28 : vector<1x64xf32>
      %c0_19 = arith.constant 0 : index
      %c0_20 = arith.constant 0 : index
      %30 = vector.load %arg15[%c0_19, %c0_20] : memref<1x64xf32, #tpu.memory_space<vmem>>, vector<1x64xf32>
      tpu.vector_store %arg15[%c0_19, %c0_20], %29 {strides = array<i32>} : memref<1x64xf32, #tpu.memory_space<vmem>>, vector<1x64xf32>,
    } else {
    }
    %c1_i32 = arith.constant 1 : i32
    %12 = arith.cmpi eq, %arg0, %c1_i32 : i32
    %13 = arith.extui %12 : i1 to i32
    %c0_i32_7 = arith.constant 0 : i32
    %14 = arith.cmpi ne, %13, %c0_i32_7 : i32
    scf.if %14 {
      %c0_9 = arith.constant 0 : index
      %c0_10 = arith.constant 0 : index
      %18 = vector.load %arg14[%c0_9, %c0_10] : memref<1x64xf32, #tpu.memory_space<vmem>>, vector<1x64xf32>
      %cst = arith.constant 9.765625E-4 : f32
      %19 = vector.broadcast %cst : f32 to vector<1x64xf32>
      %20 = arith.mulf %18, %19 : vector<1x64xf32>
      %c0_11 = arith.constant 0 : index
      %c0_12 = arith.constant 0 : index
      %21 = vector.load %arg15[%c0_11, %c0_12] : memref<1x64xf32, #tpu.memory_space<vmem>>, vector<1x64xf32>
      %cst_13 = arith.constant 9.765625E-4 : f32
      %22 = vector.broadcast %cst_13 : f32 to vector<1x64xf32>
      %23 = arith.mulf %21, %22 : vector<1x64xf32>
      %24 = arith.mulf %20, %20 : vector<1x64xf32>
      %25 = arith.subf %23, %24 : vector<1x64xf32>
      %cst_14 = arith.constant 0.000000e+00 : f32
      %26 = vector.broadcast %cst_14 : f32 to vector<1x64xf32>
      %27 = arith.maximumf %25, %26 : vector<1x64xf32>
      %cst_15 = arith.constant 9.99999974E-6 : f32
      %28 = vector.broadcast %cst_15 : f32 to vector<1x64xf32>
      %29 = arith.addf %27, %28 : vector<1x64xf32>
      %30 = math.rsqrt %29 : vector<1x64xf32>
      %c0_16 = arith.constant 0 : index
      %c0_17 = arith.constant 0 : index
      %31 = vector.load %arg5[%c0_16, %c0_17] : memref<1x64xf32, #tpu.memory_space<vmem>>, vector<1x64xf32>
      %32 = arith.mulf %30, %31 : vector<1x64xf32>
      %c0_18 = arith.constant 0 : index
      %c0_19 = arith.constant 0 : index
      %33 = vector.load %arg6[%c0_18, %c0_19] : memref<1x64xf32, #tpu.memory_space<vmem>>, vector<1x64xf32>
      %34 = arith.mulf %20, %32 : vector<1x64xf32>
      %35 = arith.subf %33, %34 : vector<1x64xf32>
      %c0_20 = arith.constant 0 : index
      %c0_21 = arith.constant 0 : index
      %36 = vector.load %arg4[%c0_20, %c0_21] : memref<12x64xbf16, #tpu.memory_space<vmem>>, vector<12x64xbf16>
      %37 = arith.extf %36 : vector<12x64xbf16> to vector<12x64xf32>
      %38 = vector.broadcast %32 : vector<1x64xf32> to vector<12x64xf32>
      %39 = arith.mulf %37, %38 : vector<12x64xf32>
      %40 = arith.truncf %39 : vector<12x64xf32> to vector<12x64xbf16>
      %cst_22 = arith.constant dense<0.000000e+00> : vector<128x64xf32>
      %41 = tpu.matmul %8, %40, %cst_22 {dimension_numbers = #tpu.dot_dimension_numbers<[1], [0], [0], [1], [0, 0, 1, 1], [], []>} : vector<128x12xbf16>, vector<12x64xbf16>, vector<128x64xf32> -> vector<128x64xf32>
      %42 = vector.broadcast %35 : vector<1x64xf32> to vector<128x64xf32>
      %43 = arith.addf %41, %42 : vector<128x64xf32>
      %cst_23 = arith.constant 0.000000e+00 : f32
      %44 = vector.broadcast %cst_23 : f32 to vector<128x64xf32>
      %45 = arith.maximumf %43, %44 : vector<128x64xf32>
      %46 = arith.truncf %45 : vector<128x64xf32> to vector<128x64xbf16>
      %c0_24 = arith.constant 0 : index
      %c0_25 = arith.constant 0 : index
      %47 = vector.load %arg7[%c0_24, %c0_25] : memref<64x128xbf16, #tpu.memory_space<vmem>>, vector<64x128xbf16>
      %cst_26 = arith.constant dense<0.000000e+00> : vector<128x128xf32>
      %48 = tpu.matmul %46, %47, %cst_26 {dimension_numbers = #tpu.dot_dimension_numbers<[1], [0], [0], [1], [0, 0, 1, 1], [], []>} : vector<128x64xbf16>, vector<64x128xbf16>, vector<128x128xf32> -> vector<128x128xf32>
      %c0_27 = arith.constant 0 : index
      %c0_28 = arith.constant 0 : index
      %49 = vector.load %arg16[%c0_27, %c0_28] : memref<1x128xf32, #tpu.memory_space<vmem>>, vector<1x128xf32>
      %cst_29 = arith.constant dense<0.000000e+00> : vector<128xf32>
      %50 = vector.multi_reduction <add>, %48, %cst_29 [0] : vector<128x128xf32> to vector<128xf32>
      %51 = vector.shape_cast %50 : vector<128xf32> to vector<1x128xf32>
      %52 = arith.addf %49, %51 : vector<1x128xf32>
      %c0_30 = arith.constant 0 : index
      %c0_31 = arith.constant 0 : index
      %53 = vector.load %arg16[%c0_30, %c0_31] : memref<1x128xf32, #tpu.memory_space<vmem>>, vector<1x128xf32>
      tpu.vector_store %arg16[%c0_30, %c0_31], %52 {strides = array<i32>} : memref<1x128xf32, #tpu.memory_space<vmem>>, vector<1x128xf32>,
      %c0_32 = arith.constant 0 : index
      %c0_33 = arith.constant 0 : index
      %54 = vector.load %arg17[%c0_32, %c0_33] : memref<1x128xf32, #tpu.memory_space<vmem>>, vector<1x128xf32>
      %55 = arith.mulf %48, %48 : vector<128x128xf32>
      %cst_34 = arith.constant dense<0.000000e+00> : vector<128xf32>
      %56 = vector.multi_reduction <add>, %55, %cst_34 [0] : vector<128x128xf32> to vector<128xf32>
      %57 = vector.shape_cast %56 : vector<128xf32> to vector<1x128xf32>
      %58 = arith.addf %54, %57 : vector<1x128xf32>
      %c0_35 = arith.constant 0 : index
      %c0_36 = arith.constant 0 : index
      %59 = vector.load %arg17[%c0_35, %c0_36] : memref<1x128xf32, #tpu.memory_space<vmem>>, vector<1x128xf32>
      tpu.vector_store %arg17[%c0_35, %c0_36], %58 {strides = array<i32>} : memref<1x128xf32, #tpu.memory_space<vmem>>, vector<1x128xf32>,
    } else {
    }
    %c2_i32 = arith.constant 2 : i32
    %15 = arith.cmpi eq, %arg0, %c2_i32 : i32
    %16 = arith.extui %15 : i1 to i32
    %c0_i32_8 = arith.constant 0 : i32
    %17 = arith.cmpi ne, %16, %c0_i32_8 : i32
    scf.if %17 {
      %c0_9 = arith.constant 0 : index
      %c0_10 = arith.constant 0 : index
      %18 = vector.load %arg14[%c0_9, %c0_10] : memref<1x64xf32, #tpu.memory_space<vmem>>, vector<1x64xf32>
      %cst = arith.constant 9.765625E-4 : f32
      %19 = vector.broadcast %cst : f32 to vector<1x64xf32>
      %20 = arith.mulf %18, %19 : vector<1x64xf32>
      %c0_11 = arith.constant 0 : index
      %c0_12 = arith.constant 0 : index
      %21 = vector.load %arg15[%c0_11, %c0_12] : memref<1x64xf32, #tpu.memory_space<vmem>>, vector<1x64xf32>
      %cst_13 = arith.constant 9.765625E-4 : f32
      %22 = vector.broadcast %cst_13 : f32 to vector<1x64xf32>
      %23 = arith.mulf %21, %22 : vector<1x64xf32>
      %24 = arith.mulf %20, %20 : vector<1x64xf32>
      %25 = arith.subf %23, %24 : vector<1x64xf32>
      %cst_14 = arith.constant 0.000000e+00 : f32
      %26 = vector.broadcast %cst_14 : f32 to vector<1x64xf32>
      %27 = arith.maximumf %25, %26 : vector<1x64xf32>
      %cst_15 = arith.constant 9.99999974E-6 : f32
      %28 = vector.broadcast %cst_15 : f32 to vector<1x64xf32>
      %29 = arith.addf %27, %28 : vector<1x64xf32>
      %30 = math.rsqrt %29 : vector<1x64xf32>
      %c0_16 = arith.constant 0 : index
      %c0_17 = arith.constant 0 : index
      %31 = vector.load %arg5[%c0_16, %c0_17] : memref<1x64xf32, #tpu.memory_space<vmem>>, vector<1x64xf32>
      %32 = arith.mulf %30, %31 : vector<1x64xf32>
      %c0_18 = arith.constant 0 : index
      %c0_19 = arith.constant 0 : index
      %33 = vector.load %arg6[%c0_18, %c0_19] : memref<1x64xf32, #tpu.memory_space<vmem>>, vector<1x64xf32>
      %34 = arith.mulf %20, %32 : vector<1x64xf32>
      %35 = arith.subf %33, %34 : vector<1x64xf32>
      %c0_20 = arith.constant 0 : index
      %c0_21 = arith.constant 0 : index
      %36 = vector.load %arg16[%c0_20, %c0_21] : memref<1x128xf32, #tpu.memory_space<vmem>>, vector<1x128xf32>
      %cst_22 = arith.constant 9.765625E-4 : f32
      %37 = vector.broadcast %cst_22 : f32 to vector<1x128xf32>
      %38 = arith.mulf %36, %37 : vector<1x128xf32>
      %c0_23 = arith.constant 0 : index
      %c0_24 = arith.constant 0 : index
      %39 = vector.load %arg17[%c0_23, %c0_24] : memref<1x128xf32, #tpu.memory_space<vmem>>, vector<1x128xf32>
      %cst_25 = arith.constant 9.765625E-4 : f32
      %40 = vector.broadcast %cst_25 : f32 to vector<1x128xf32>
      %41 = arith.mulf %39, %40 : vector<1x128xf32>
      %42 = arith.mulf %38, %38 : vector<1x128xf32>
      %43 = arith.subf %41, %42 : vector<1x128xf32>
      %cst_26 = arith.constant 0.000000e+00 : f32
      %44 = vector.broadcast %cst_26 : f32 to vector<1x128xf32>
      %45 = arith.maximumf %43, %44 : vector<1x128xf32>
      %cst_27 = arith.constant 9.99999974E-6 : f32
      %46 = vector.broadcast %cst_27 : f32 to vector<1x128xf32>
      %47 = arith.addf %45, %46 : vector<1x128xf32>
      %48 = math.rsqrt %47 : vector<1x128xf32>
      %c0_28 = arith.constant 0 : index
      %c0_29 = arith.constant 0 : index
      %49 = vector.load %arg8[%c0_28, %c0_29] : memref<1x128xf32, #tpu.memory_space<vmem>>, vector<1x128xf32>
      %50 = arith.mulf %48, %49 : vector<1x128xf32>
      %c0_30 = arith.constant 0 : index
      %c0_31 = arith.constant 0 : index
      %51 = vector.load %arg9[%c0_30, %c0_31] : memref<1x128xf32, #tpu.memory_space<vmem>>, vector<1x128xf32>
      %52 = arith.mulf %38, %50 : vector<1x128xf32>
      %53 = arith.subf %51, %52 : vector<1x128xf32>
      %c0_32 = arith.constant 0 : index
      %c0_33 = arith.constant 0 : index
      %54 = vector.load %arg4[%c0_32, %c0_33] : memref<12x64xbf16, #tpu.memory_space<vmem>>, vector<12x64xbf16>
      %55 = arith.extf %54 : vector<12x64xbf16> to vector<12x64xf32>
      %56 = vector.broadcast %32 : vector<1x64xf32> to vector<12x64xf32>
      %57 = arith.mulf %55, %56 : vector<12x64xf32>
      %58 = arith.truncf %57 : vector<12x64xf32> to vector<12x64xbf16>
      %cst_34 = arith.constant dense<0.000000e+00> : vector<128x64xf32>
      %59 = tpu.matmul %8, %58, %cst_34 {dimension_numbers = #tpu.dot_dimension_numbers<[1], [0], [0], [1], [0, 0, 1, 1], [], []>} : vector<128x12xbf16>, vector<12x64xbf16>, vector<128x64xf32> -> vector<128x64xf32>
      %60 = vector.broadcast %35 : vector<1x64xf32> to vector<128x64xf32>
      %61 = arith.addf %59, %60 : vector<128x64xf32>
      %cst_35 = arith.constant 0.000000e+00 : f32
      %62 = vector.broadcast %cst_35 : f32 to vector<128x64xf32>
      %63 = arith.maximumf %61, %62 : vector<128x64xf32>
      %64 = arith.truncf %63 : vector<128x64xf32> to vector<128x64xbf16>
      %c0_36 = arith.constant 0 : index
      %c0_37 = arith.constant 0 : index
      %65 = vector.load %arg7[%c0_36, %c0_37] : memref<64x128xbf16, #tpu.memory_space<vmem>>, vector<64x128xbf16>
      %66 = arith.extf %65 : vector<64x128xbf16> to vector<64x128xf32>
      %67 = vector.broadcast %50 : vector<1x128xf32> to vector<64x128xf32>
      %68 = arith.mulf %66, %67 : vector<64x128xf32>
      %69 = arith.truncf %68 : vector<64x128xf32> to vector<64x128xbf16>
      %cst_38 = arith.constant dense<0.000000e+00> : vector<128x128xf32>
      %70 = tpu.matmul %64, %69, %cst_38 {dimension_numbers = #tpu.dot_dimension_numbers<[1], [0], [0], [1], [0, 0, 1, 1], [], []>} : vector<128x64xbf16>, vector<64x128xbf16>, vector<128x128xf32> -> vector<128x128xf32>
      %71 = vector.broadcast %53 : vector<1x128xf32> to vector<128x128xf32>
      %72 = arith.addf %70, %71 : vector<128x128xf32>
      %cst_39 = arith.constant 0.000000e+00 : f32
      %73 = vector.broadcast %cst_39 : f32 to vector<128x128xf32>
      %74 = arith.maximumf %72, %73 : vector<128x128xf32>
      %75 = arith.truncf %74 : vector<128x128xf32> to vector<128x128xbf16>
      %c0_40 = arith.constant 0 : index
      %c0_41 = arith.constant 0 : index
      %76 = vector.load %arg10[%c0_40, %c0_41] : memref<128x256xbf16, #tpu.memory_space<vmem>>, vector<128x256xbf16>
      %cst_42 = arith.constant dense<0.000000e+00> : vector<128x256xf32>
      %77 = tpu.matmul %75, %76, %cst_42 {dimension_numbers = #tpu.dot_dimension_numbers<[1], [0], [0], [1], [0, 0, 1, 1], [], []>} : vector<128x128xbf16>, vector<128x256xbf16>, vector<128x256xf32> -> vector<128x256xf32>
      %c0_43 = arith.constant 0 : index
      %c0_44 = arith.constant 0 : index
      %78 = vector.load %arg18[%c0_43, %c0_44] : memref<1x256xf32, #tpu.memory_space<vmem>>, vector<1x256xf32>
      %cst_45 = arith.constant dense<0.000000e+00> : vector<256xf32>
      %79 = vector.multi_reduction <add>, %77, %cst_45 [0] : vector<128x256xf32> to vector<256xf32>
      %80 = vector.shape_cast %79 : vector<256xf32> to vector<1x256xf32>
      %81 = arith.addf %78, %80 : vector<1x256xf32>
      %c0_46 = arith.constant 0 : index
      %c0_47 = arith.constant 0 : index
      %82 = vector.load %arg18[%c0_46, %c0_47] : memref<1x256xf32, #tpu.memory_space<vmem>>, vector<1x256xf32>
      tpu.vector_store %arg18[%c0_46, %c0_47], %81 {strides = array<i32>} : memref<1x256xf32, #tpu.memory_space<vmem>>, vector<1x256xf32>,
      %c0_48 = arith.constant 0 : index
      %c0_49 = arith.constant 0 : index
      %83 = vector.load %arg19[%c0_48, %c0_49] : memref<1x256xf32, #tpu.memory_space<vmem>>, vector<1x256xf32>
      %84 = arith.mulf %77, %77 : vector<128x256xf32>
      %cst_50 = arith.constant dense<0.000000e+00> : vector<256xf32>
      %85 = vector.multi_reduction <add>, %84, %cst_50 [0] : vector<128x256xf32> to vector<256xf32>
      %86 = vector.shape_cast %85 : vector<256xf32> to vector<1x256xf32>
      %87 = arith.addf %83, %86 : vector<1x256xf32>
      %c0_51 = arith.constant 0 : index
      %c0_52 = arith.constant 0 : index
      %88 = vector.load %arg19[%c0_51, %c0_52] : memref<1x256xf32, #tpu.memory_space<vmem>>, vector<1x256xf32>
      tpu.vector_store %arg19[%c0_51, %c0_52], %87 {strides = array<i32>} : memref<1x256xf32, #tpu.memory_space<vmem>>, vector<1x256xf32>,
      %89 = arith.index_cast %arg1 : i32 to index
      %c0_53 = arith.constant 0 : index
      %c0_54 = arith.constant 0 : index
      %90 = vector.load %arg20[%89, %c0_53, %c0_54] : memref<2x1x256xf32, #tpu.memory_space<vmem>>, vector<1x1x256xf32>
      %91 = vector.shape_cast %90 : vector<1x1x256xf32> to vector<1x256xf32>
      %cst_55 = arith.constant dense<0xFF800000> : vector<256xf32>
      %92 = vector.multi_reduction <maximumf>, %77, %cst_55 [0] : vector<128x256xf32> to vector<256xf32>
      %93 = vector.shape_cast %92 : vector<256xf32> to vector<1x256xf32>
      %94 = arith.maximumf %91, %93 : vector<1x256xf32>
      %95 = arith.index_cast %arg1 : i32 to index
      %c0_56 = arith.constant 0 : index
      %c0_57 = arith.constant 0 : index
      %96 = vector.load %arg20[%95, %c0_56, %c0_57] : memref<2x1x256xf32, #tpu.memory_space<vmem>>, vector<1x1x256xf32>
      %97 = vector.shape_cast %96 : vector<1x1x256xf32> to vector<1x256xf32>
      %98 = vector.shape_cast %94 : vector<1x256xf32> to vector<1x1x256xf32>
      tpu.vector_store %arg20[%95, %c0_56, %c0_57], %98 {strides = array<i32>} : memref<2x1x256xf32, #tpu.memory_space<vmem>>, vector<1x1x256xf32>,
      %99 = arith.index_cast %arg1 : i32 to index
      %c0_58 = arith.constant 0 : index
      %c0_59 = arith.constant 0 : index
      %100 = vector.load %arg21[%99, %c0_58, %c0_59] : memref<2x1x256xf32, #tpu.memory_space<vmem>>, vector<1x1x256xf32>
      %101 = vector.shape_cast %100 : vector<1x1x256xf32> to vector<1x256xf32>
      %cst_60 = arith.constant dense<0x7F800000> : vector<256xf32>
      %102 = vector.multi_reduction <minimumf>, %77, %cst_60 [0] : vector<128x256xf32> to vector<256xf32>
      %103 = vector.shape_cast %102 : vector<256xf32> to vector<1x256xf32>
      %104 = arith.minimumf %101, %103 : vector<1x256xf32>
      %105 = arith.index_cast %arg1 : i32 to index
      %c0_61 = arith.constant 0 : index
      %c0_62 = arith.constant 0 : index
      %106 = vector.load %arg21[%105, %c0_61, %c0_62] : memref<2x1x256xf32, #tpu.memory_space<vmem>>, vector<1x1x256xf32>
      %107 = vector.shape_cast %106 : vector<1x1x256xf32> to vector<1x256xf32>
      %108 = vector.shape_cast %104 : vector<1x256xf32> to vector<1x1x256xf32>
      tpu.vector_store %arg21[%105, %c0_61, %c0_62], %108 {strides = array<i32>} : memref<2x1x256xf32, #tpu.memory_space<vmem>>, vector<1x1x256xf32>,
      %c1_i32_63 = arith.constant 1 : i32
      %109 = arith.cmpi eq, %arg1, %c1_i32_63 : i32
      %c3_i32 = arith.constant 3 : i32
      %110 = arith.cmpi eq, %arg2, %c3_i32 : i32
      %111 = arith.andi %109, %110 : i1
      %112 = arith.extui %111 : i1 to i32
      %c0_i32_64 = arith.constant 0 : i32
      %113 = arith.cmpi ne, %112, %c0_i32_64 : i32
      scf.if %113 {
        %c0_65 = arith.constant 0 : index
        %c0_66 = arith.constant 0 : index
        %114 = vector.load %arg18[%c0_65, %c0_66] : memref<1x256xf32, #tpu.memory_space<vmem>>, vector<1x256xf32>
        %cst_67 = arith.constant 9.765625E-4 : f32
        %115 = vector.broadcast %cst_67 : f32 to vector<1x256xf32>
        %116 = arith.mulf %114, %115 : vector<1x256xf32>
        %c0_68 = arith.constant 0 : index
        %c0_69 = arith.constant 0 : index
        %117 = vector.load %arg19[%c0_68, %c0_69] : memref<1x256xf32, #tpu.memory_space<vmem>>, vector<1x256xf32>
        %cst_70 = arith.constant 9.765625E-4 : f32
        %118 = vector.broadcast %cst_70 : f32 to vector<1x256xf32>
        %119 = arith.mulf %117, %118 : vector<1x256xf32>
        %120 = arith.mulf %116, %116 : vector<1x256xf32>
        %121 = arith.subf %119, %120 : vector<1x256xf32>
        %cst_71 = arith.constant 0.000000e+00 : f32
        %122 = vector.broadcast %cst_71 : f32 to vector<1x256xf32>
        %123 = arith.maximumf %121, %122 : vector<1x256xf32>
        %cst_72 = arith.constant 9.99999974E-6 : f32
        %124 = vector.broadcast %cst_72 : f32 to vector<1x256xf32>
        %125 = arith.addf %123, %124 : vector<1x256xf32>
        %126 = math.rsqrt %125 : vector<1x256xf32>
        %c0_73 = arith.constant 0 : index
        %c0_74 = arith.constant 0 : index
        %127 = vector.load %arg11[%c0_73, %c0_74] : memref<1x256xf32, #tpu.memory_space<vmem>>, vector<1x256xf32>
        %128 = arith.mulf %126, %127 : vector<1x256xf32>
        %c0_75 = arith.constant 0 : index
        %c0_76 = arith.constant 0 : index
        %129 = vector.load %arg12[%c0_75, %c0_76] : memref<1x256xf32, #tpu.memory_space<vmem>>, vector<1x256xf32>
        %130 = arith.mulf %116, %128 : vector<1x256xf32>
        %131 = arith.subf %129, %130 : vector<1x256xf32>
        %cst_77 = arith.constant 0.000000e+00 : f32
        %132 = vector.broadcast %cst_77 : f32 to vector<1x256xf32>
        %133 = arith.cmpf oge, %128, %132 : vector<1x256xf32>
        %c0_78 = arith.constant 0 : index
        %c0_79 = arith.constant 0 : index
        %c0_80 = arith.constant 0 : index
        %134 = vector.load %arg20[%c0_78, %c0_79, %c0_80] : memref<2x1x256xf32, #tpu.memory_space<vmem>>, vector<1x1x256xf32>
        %135 = vector.shape_cast %134 : vector<1x1x256xf32> to vector<1x256xf32>
        %c0_81 = arith.constant 0 : index
        %c0_82 = arith.constant 0 : index
        %c0_83 = arith.constant 0 : index
        %136 = vector.load %arg21[%c0_81, %c0_82, %c0_83] : memref<2x1x256xf32, #tpu.memory_space<vmem>>, vector<1x1x256xf32>
        %137 = vector.shape_cast %136 : vector<1x1x256xf32> to vector<1x256xf32>
        %138 = arith.select %133, %135, %137 : vector<1x256xi1>, vector<1x256xf32>
        %cst_84 = arith.constant 0.000000e+00 : f32
        %139 = vector.broadcast %cst_84 : f32 to vector<1x256xf32>
        %140 = arith.cmpf oge, %128, %139 : vector<1x256xf32>
        %c1 = arith.constant 1 : index
        %c0_85 = arith.constant 0 : index
        %c0_86 = arith.constant 0 : index
        %141 = vector.load %arg20[%c1, %c0_85, %c0_86] : memref<2x1x256xf32, #tpu.memory_space<vmem>>, vector<1x1x256xf32>
        %142 = vector.shape_cast %141 : vector<1x1x256xf32> to vector<1x256xf32>
        %c1_87 = arith.constant 1 : index
        %c0_88 = arith.constant 0 : index
        %c0_89 = arith.constant 0 : index
        %143 = vector.load %arg21[%c1_87, %c0_88, %c0_89] : memref<2x1x256xf32, #tpu.memory_space<vmem>>, vector<1x1x256xf32>
        %144 = vector.shape_cast %143 : vector<1x1x256xf32> to vector<1x256xf32>
        %145 = arith.select %140, %142, %144 : vector<1x256xi1>, vector<1x256xf32>
        %146 = tpu.concatenate %138, %145 in 0 : vector<1x256xf32>, vector<1x256xf32> -> vector<2x256xf32>
        %147 = vector.broadcast %128 : vector<1x256xf32> to vector<2x256xf32>
        %148 = arith.mulf %146, %147 : vector<2x256xf32>
        %149 = vector.broadcast %131 : vector<1x256xf32> to vector<2x256xf32>
        %150 = arith.addf %148, %149 : vector<2x256xf32>
        %c0_90 = arith.constant 0 : index
        %c0_91 = arith.constant 0 : index
        %151 = vector.load %arg13[%c0_90, %c0_91] : memref<2x256xf32, #tpu.memory_space<vmem>>, vector<2x256xf32>
        tpu.vector_store %arg13[%c0_90, %c0_91], %150 {strides = array<i32>} : memref<2x256xf32, #tpu.memory_space<vmem>>, vector<2x256xf32>,
      } else {
      }
    } else {
    }
    return
  }
  func.func @transform_0(%arg0: i32, %arg1: i32, %arg2: i32) -> (i32, i32, i32) {
    %c0_i32 = arith.constant 0 : i32
    %c0_i32_0 = arith.constant 0 : i32
    return %arg1, %arg2, %c0_i32 : i32, i32, i32
  }
  func.func @transform_1(%arg0: i32, %arg1: i32, %arg2: i32) -> (i32, i32) {
    %c0_i32 = arith.constant 0 : i32
    %c0_i32_0 = arith.constant 0 : i32
    %c0_i32_1 = arith.constant 0 : i32
    return %c0_i32, %c0_i32_0 : i32, i32
  }
  func.func @transform_2(%arg0: i32, %arg1: i32, %arg2: i32) -> (i32, i32) {
    %c0_i32 = arith.constant 0 : i32
    %c0_i32_0 = arith.constant 0 : i32
    %c0_i32_1 = arith.constant 0 : i32
    return %c0_i32, %c0_i32_0 : i32, i32
  }
  func.func @transform_3(%arg0: i32, %arg1: i32, %arg2: i32) -> (i32, i32) {
    %c0_i32 = arith.constant 0 : i32
    %c0_i32_0 = arith.constant 0 : i32
    %c0_i32_1 = arith.constant 0 : i32
    return %c0_i32, %c0_i32_0 : i32, i32
  }
  func.func @transform_4(%arg0: i32, %arg1: i32, %arg2: i32) -> (i32, i32) {
    %c0_i32 = arith.constant 0 : i32
    %c0_i32_0 = arith.constant 0 : i32
    %c0_i32_1 = arith.constant 0 : i32
    return %c0_i32, %c0_i32_0 : i32, i32
  }
  func.func @transform_5(%arg0: i32, %arg1: i32, %arg2: i32) -> (i32, i32) {
    %c0_i32 = arith.constant 0 : i32
    %c0_i32_0 = arith.constant 0 : i32
    %c0_i32_1 = arith.constant 0 : i32
    return %c0_i32, %c0_i32_0 : i32, i32
  }
  func.func @transform_6(%arg0: i32, %arg1: i32, %arg2: i32) -> (i32, i32) {
    %c0_i32 = arith.constant 0 : i32
    %c0_i32_0 = arith.constant 0 : i32
    %c0_i32_1 = arith.constant 0 : i32
    return %c0_i32, %c0_i32_0 : i32, i32
  }
  func.func @transform_7(%arg0: i32, %arg1: i32, %arg2: i32) -> (i32, i32) {
    %c0_i32 = arith.constant 0 : i32
    %c0_i32_0 = arith.constant 0 : i32
    %c0_i32_1 = arith.constant 0 : i32
    return %c0_i32, %c0_i32_0 : i32, i32
  }
  func.func @transform_8(%arg0: i32, %arg1: i32, %arg2: i32) -> (i32, i32) {
    %c0_i32 = arith.constant 0 : i32
    %c0_i32_0 = arith.constant 0 : i32
    %c0_i32_1 = arith.constant 0 : i32
    return %c0_i32, %c0_i32_0 : i32, i32
  }
  func.func @transform_9(%arg0: i32, %arg1: i32, %arg2: i32) -> (i32, i32) {
    %c0_i32 = arith.constant 0 : i32
    %c0_i32_0 = arith.constant 0 : i32
    %c0_i32_1 = arith.constant 0 : i32
    return %c0_i32, %c0_i32_0 : i32, i32
  }
  func.func @transform_10(%arg0: i32, %arg1: i32, %arg2: i32) -> (i32, i32) {
    %c0_i32 = arith.constant 0 : i32
    %c0_i32_0 = arith.constant 0 : i32
    %c0_i32_1 = arith.constant 0 : i32
    return %c0_i32, %c0_i32_0 : i32, i32
  }
}

</mosaic_0001>

<llo_original>
// kernel: pointnet_feat_two_stream.1
$region0: #{pointnet_feat_two_stream.1}
  #allocation0 [shape = 'u32[]', space=smem, size = 0x4, offset = 0x4, fixed_abs, tag = 'smem constant byte address 0x4 - core index']
  #allocation1 [shape = 'u32[144,128]{1,0:T(1,128)}', space=vmem, size = 0x12000, scoped, tag = 'internal scratch']
  #allocation2 [shape = 'f32[1,64]{1,0:T(1,128)}', space=vmem, size = 0x200, scoped, tag = 'scratch operand']
  #allocation3 [shape = 'f32[1,64]{1,0:T(1,128)}', space=vmem, size = 0x200, scoped, tag = 'scratch operand']
  #allocation4 [shape = 'f32[1,128]{1,0:T(1,128)}', space=vmem, size = 0x200, scoped, tag = 'scratch operand']
  #allocation5 [shape = 'f32[1,128]{1,0:T(1,128)}', space=vmem, size = 0x200, scoped, tag = 'scratch operand']
  #allocation6 [shape = 'f32[1,256]{1,0:T(1,128)}', space=vmem, size = 0x400, scoped, tag = 'scratch operand']
  #allocation7 [shape = 'f32[1,256]{1,0:T(1,128)}', space=vmem, size = 0x400, scoped, tag = 'scratch operand']
  #allocation8 [shape = 'f32[2,1,256]{2,1,0:T(1,128)}', space=vmem, size = 0x800, scoped, tag = 'scratch operand']
  #allocation9 [shape = 'f32[2,1,256]{2,1,0:T(1,128)}', space=vmem, size = 0x800, scoped, tag = 'scratch operand']
  %s0 = inlined_call_operand.vmem [shape: bf16[2,512,12], index: 0, kind: input, shape index: {}]
  %s1 = inlined_call_operand.vmem [shape: bf16[12,64], index: 1, kind: input, shape index: {}]
  %s2 = inlined_call_operand.vmem [shape: f32[1,64], index: 2, kind: input, shape index: {}]
  %s3 = inlined_call_operand.vmem [shape: f32[1,64], index: 3, kind: input, shape index: {}]
  %s4 = inlined_call_operand.vmem [shape: bf16[64,128], index: 4, kind: input, shape index: {}]
  %s5 = inlined_call_operand.vmem [shape: f32[1,128], index: 5, kind: input, shape index: {}]
  %s6 = inlined_call_operand.vmem [shape: f32[1,128], index: 6, kind: input, shape index: {}]
  %s7 = inlined_call_operand.vmem [shape: bf16[128,256], index: 7, kind: input, shape index: {}]
  %s8 = inlined_call_operand.vmem [shape: f32[1,256], index: 8, kind: input, shape index: {}]
  %s9 = inlined_call_operand.vmem [shape: f32[1,256], index: 9, kind: input, shape index: {}]
  %s10 = inlined_call_operand.hbm [shape: f32[2,256], index: 10, kind: output, shape index: {}]
  %s11 = sld [smem:[#allocation0]]
  $region93: #{pointnet_feat_two_stream.1} parent=0
    _
  %s13 = ssub.s32 1, %s11
  %s14 = scalar_select 0, %s13, %s11
  $region1: #{pointnet_feat_two_stream.1} parent=0
    #allocation10 [shape = 'u8[2048]{0}', space=vmem, size = 0x800, scoped, tag = 'output window, operand 0, single buffered']
    #allocation11 [shape = 's32[2]{0}', space=sflag, size = 0x8, scoped, tag = 'scoped memory for pointnet_feat_two_stream.1']
    %15 = vsyncpa [#allocation11], 0
    loop: start=0, step=1, limit=26
    $region2: #{pointnet_feat_two_stream.1} parent=1 // loop_pre_header
      _
    $region3: #{pointnet_feat_two_stream.1} parent=1 // loop_header
      %s17 = sphi 0, %s21
      %p18 = scmp.ge.s32.totalorder %s17, 26
      %s24 = sphi 0, %s43
      %s25 = sphi 0, %s39
      %s26 = sphi 0, %s35
      %s27 = sphi 0, %s24
      %s28 = sphi 0, %s25
      %s29 = sphi 0, %s26
      %s30 = sphi 0, %s27
      %s31 = sphi 0, %s28
      %s32 = sphi 0, %s29
      %s48 = sphi 0, %s50
      %s51 = sphi 0, %s48
      %s52 = sphi 0, %s51
      %s68 = sphi 0, %s52
      %s72 = sphi 0, %s72
      %s74 = sphi 0, %s72
      %s75 = sphi 0, %s74
      %s89 = sphi 0, %s75
      %s93 = sphi 0, %s93
      %s95 = sphi 0, %s93
      %s96 = sphi 0, %s95
      %s110 = sphi 0, %s96
      %s114 = sphi 0, %s114
      %s116 = sphi 0, %s114
      %s117 = sphi 0, %s116
      %s131 = sphi 0, %s117
      %s135 = sphi 0, %s135
      %s137 = sphi 0, %s135
      %s138 = sphi 0, %s137
      %s152 = sphi 0, %s138
      %s156 = sphi 0, %s156
      %s158 = sphi 0, %s156
      %s159 = sphi 0, %s158
      %s173 = sphi 0, %s159
      %s177 = sphi 0, %s177
      %s179 = sphi 0, %s177
      %s180 = sphi 0, %s179
      %s194 = sphi 0, %s180
      %s198 = sphi 0, %s198
      %s200 = sphi 0, %s198
      %s201 = sphi 0, %s200
      %s215 = sphi 0, %s201
      %s219 = sphi 0, %s219
      %s221 = sphi 0, %s219
      %s222 = sphi 0, %s221
      %s236 = sphi 0, %s222
      %s240 = sphi 0, %s240
      %s242 = sphi 0, %s240
      %s243 = sphi 0, %s242
      %s257 = sphi 0, %s243
      %s261 = sphi 0, %s261
      %s263 = sphi 0, %s261
      %s264 = sphi 0, %s263
      %s278 = sphi 0, %s264
    $region4: #{pointnet_feat_two_stream.1} parent=1 // loop_header_branch
      %20 = sbr.rel (%p18) target = $region8
    $region5: #{pointnet_feat_two_stream.1} parent=1 // loop_body
      %s22 = ssub.s32 %s17, 1
      %s23 = ssub.s32 %s17, 2
      %s33 = sadd.s32 1, %s26
      %p34 = scmp.ge.s32.totalorder %s33, 4
      %s35 = scalar_select %p34, 0, %s33
      %s36 = sadd.s32 1, %s25
      %s37 = scalar_select %p34, %s36, %s25
      %p38 = scmp.ge.s32.totalorder %s37, 2
      %s39 = scalar_select %p38, 0, %s37
      %s40 = sadd.s32 1, %s24
      %s41 = scalar_select %p38, %s40, %s24
      %p42 = scmp.ge.s32.totalorder %s41, 3
      %s43 = scalar_select %p42, 0, %s41
      %s44 = ssub.s32 %s25, %s39
      %s45 = ssub.s32 %s26, %s35
      %s46 = sor.u32 %s44, %s45
      %p47 = scmp.eq.s32.totalorder %s46, 0
      %s49 = sadd.s32 %s48, 1
      %s50 = scalar_select %p47, %s48, %s49
      %p53 = pneg %p47
      %p54 = scmp.eq.s32.totalorder %s17, 23
      %p55 = por %p53, %p54
      %p56 = scmp.ne.s32.totalorder %s48, %s51
      %p57 = scmp.eq.s32.totalorder %s17, 0
      %p58 = por %p56, %p57
      %p59 = scmp.ne.s32.totalorder %s48, %s51
      %p60 = scmp.eq.s32.totalorder %s22, 23
      %p61 = por %p59, %p60
      %p62 = scmp.ne.s32.totalorder %s51, %s52
      %p63 = scmp.eq.s32.totalorder %s22, 0
      %p64 = por %p62, %p63
      %p65 = scmp.ne.s32.totalorder %s51, %s52
      %p66 = scmp.eq.s32.totalorder %s23, 23
      %p67 = por %p65, %p66
      %p69 = scmp.ne.s32.totalorder %s52, %s68
      %p70 = scmp.eq.s32.totalorder %s23, 0
      %p71 = por %p69, %p70
      %s73 = sadd.s32 %s72, 1
      %p76 = scmp.eq.s32.totalorder %s17, 23
      %p77 = scmp.ne.s32.totalorder %s72, %s74
      %p78 = scmp.eq.s32.totalorder %s17, 0
      %p79 = por %p77, %p78
      %p80 = scmp.ne.s32.totalorder %s72, %s74
      %p81 = scmp.eq.s32.totalorder %s22, 23
      %p82 = por %p80, %p81
      %p83 = scmp.ne.s32.totalorder %s74, %s75
      %p84 = scmp.eq.s32.totalorder %s22, 0
      %p85 = por %p83, %p84
      %p86 = scmp.ne.s32.totalorder %s74, %s75
      %p87 = scmp.eq.s32.totalorder %s23, 23
      %p88 = por %p86, %p87
      %p90 = scmp.ne.s32.totalorder %s75, %s89
      %p91 = scmp.eq.s32.totalorder %s23, 0
      %p92 = por %p90, %p91
      %s94 = sadd.s32 %s93, 1
      %p97 = scmp.eq.s32.totalorder %s17, 23
      %p98 = scmp.ne.s32.totalorder %s93, %s95
      %p99 = scmp.eq.s32.totalorder %s17, 0
      %p100 = por %p98, %p99
      %p101 = scmp.ne.s32.totalorder %s93, %s95
      %p102 = scmp.eq.s32.totalorder %s22, 23
      %p103 = por %p101, %p102
      %p104 = scmp.ne.s32.totalorder %s95, %s96
      %p105 = scmp.eq.s32.totalorder %s22, 0
      %p106 = por %p104, %p105
      %p107 = scmp.ne.s32.totalorder %s95, %s96
      %p108 = scmp.eq.s32.totalorder %s23, 23
      %p109 = por %p107, %p108
      %p111 = scmp.ne.s32.totalorder %s96, %s110
      %p112 = scmp.eq.s32.totalorder %s23, 0
      %p113 = por %p111, %p112
      %s115 = sadd.s32 %s114, 1
      %p118 = scmp.eq.s32.totalorder %s17, 23
      %p119 = scmp.ne.s32.totalorder %s114, %s116
      %p120 = scmp.eq.s32.totalorder %s17, 0
      %p121 = por %p119, %p120
      %p122 = scmp.ne.s32.totalorder %s114, %s116
      %p123 = scmp.eq.s32.totalorder %s22, 23
      %p124 = por %p122, %p123
      %p125 = scmp.ne.s32.totalorder %s116, %s117
      %p126 = scmp.eq.s32.totalorder %s22, 0
      %p127 = por %p125, %p126
      %p128 = scmp.ne.s32.totalorder %s116, %s117
      %p129 = scmp.eq.s32.totalorder %s23, 23
      %p130 = por %p128, %p129
      %p132 = scmp.ne.s32.totalorder %s117, %s131
      %p133 = scmp.eq.s32.totalorder %s23, 0
      %p134 = por %p132, %p133
      %s136 = sadd.s32 %s135, 1
      %p139 = scmp.eq.s32.totalorder %s17, 23
      %p140 = scmp.ne.s32.totalorder %s135, %s137
      %p141 = scmp.eq.s32.totalorder %s17, 0
      %p142 = por %p140, %p141
      %p143 = scmp.ne.s32.totalorder %s135, %s137
      %p144 = scmp.eq.s32.totalorder %s22, 23
      %p145 = por %p143, %p144
      %p146 = scmp.ne.s32.totalorder %s137, %s138
      %p147 = scmp.eq.s32.totalorder %s22, 0
      %p148 = por %p146, %p147
      %p149 = scmp.ne.s32.totalorder %s137, %s138
      %p150 = scmp.eq.s32.totalorder %s23, 23
      %p151 = por %p149, %p150
      %p153 = scmp.ne.s32.totalorder %s138, %s152
      %p154 = scmp.eq.s32.totalorder %s23, 0
      %p155 = por %p153, %p154
      %s157 = sadd.s32 %s156, 1
      %p160 = scmp.eq.s32.totalorder %s17, 23
      %p161 = scmp.ne.s32.totalorder %s156, %s158
      %p162 = scmp.eq.s32.totalorder %s17, 0
      %p163 = por %p161, %p162
      %p164 = scmp.ne.s32.totalorder %s156, %s158
      %p165 = scmp.eq.s32.totalorder %s22, 23
      %p166 = por %p164, %p165
      %p167 = scmp.ne.s32.totalorder %s158, %s159
      %p168 = scmp.eq.s32.totalorder %s22, 0
      %p169 = por %p167, %p168
      %p170 = scmp.ne.s32.totalorder %s158, %s159
      %p171 = scmp.eq.s32.totalorder %s23, 23
      %p172 = por %p170, %p171
      %p174 = scmp.ne.s32.totalorder %s159, %s173
      %p175 = scmp.eq.s32.totalorder %s23, 0
      %p176 = por %p174, %p175
      %s178 = sadd.s32 %s177, 1
      %p181 = scmp.eq.s32.totalorder %s17, 23
      %p182 = scmp.ne.s32.totalorder %s177, %s179
      %p183 = scmp.eq.s32.totalorder %s17, 0
      %p184 = por %p182, %p183
      %p185 = scmp.ne.s32.totalorder %s177, %s179
      %p186 = scmp.eq.s32.totalorder %s22, 23
      %p187 = por %p185, %p186
      %p188 = scmp.ne.s32.totalorder %s179, %s180
      %p189 = scmp.eq.s32.totalorder %s22, 0
      %p190 = por %p188, %p189
      %p191 = scmp.ne.s32.totalorder %s179, %s180
      %p192 = scmp.eq.s32.totalorder %s23, 23
      %p193 = por %p191, %p192
      %p195 = scmp.ne.s32.totalorder %s180, %s194
      %p196 = scmp.eq.s32.totalorder %s23, 0
      %p197 = por %p195, %p196
      %s199 = sadd.s32 %s198, 1
      %p202 = scmp.eq.s32.totalorder %s17, 23
      %p203 = scmp.ne.s32.totalorder %s198, %s200
      %p204 = scmp.eq.s32.totalorder %s17, 0
      %p205 = por %p203, %p204
      %p206 = scmp.ne.s32.totalorder %s198, %s200
      %p207 = scmp.eq.s32.totalorder %s22, 23
      %p208 = por %p206, %p207
      %p209 = scmp.ne.s32.totalorder %s200, %s201
      %p210 = scmp.eq.s32.totalorder %s22, 0
      %p211 = por %p209, %p210
      %p212 = scmp.ne.s32.totalorder %s200, %s201
      %p213 = scmp.eq.s32.totalorder %s23, 23
      %p214 = por %p212, %p213
      %p216 = scmp.ne.s32.totalorder %s201, %s215
      %p217 = scmp.eq.s32.totalorder %s23, 0
      %p218 = por %p216, %p217
      %s220 = sadd.s32 %s219, 1
      %p223 = scmp.eq.s32.totalorder %s17, 23
      %p224 = scmp.ne.s32.totalorder %s219, %s221
      %p225 = scmp.eq.s32.totalorder %s17, 0
      %p226 = por %p224, %p225
      %p227 = scmp.ne.s32.totalorder %s219, %s221
      %p228 = scmp.eq.s32.totalorder %s22, 23
      %p229 = por %p227, %p228
      %p230 = scmp.ne.s32.totalorder %s221, %s222
      %p231 = scmp.eq.s32.totalorder %s22, 0
      %p232 = por %p230, %p231
      %p233 = scmp.ne.s32.totalorder %s221, %s222
      %p234 = scmp.eq.s32.totalorder %s23, 23
      %p235 = por %p233, %p234
      %p237 = scmp.ne.s32.totalorder %s222, %s236
      %p238 = scmp.eq.s32.totalorder %s23, 0
      %p239 = por %p237, %p238
      %s241 = sadd.s32 %s240, 1
      %p244 = scmp.eq.s32.totalorder %s17, 23
      %p245 = scmp.ne.s32.totalorder %s240, %s242
      %p246 = scmp.eq.s32.totalorder %s17, 0
      %p247 = por %p245, %p246
      %p248 = scmp.ne.s32.totalorder %s240, %s242
      %p249 = scmp.eq.s32.totalorder %s22, 23
      %p250 = por %p248, %p249
      %p251 = scmp.ne.s32.totalorder %s242, %s243
      %p252 = scmp.eq.s32.totalorder %s22, 0
      %p253 = por %p251, %p252
      %p254 = scmp.ne.s32.totalorder %s242, %s243
      %p255 = scmp.eq.s32.totalorder %s23, 23
      %p256 = por %p254, %p255
      %p258 = scmp.ne.s32.totalorder %s243, %s257
      %p259 = scmp.eq.s32.totalorder %s23, 0
      %p260 = por %p258, %p259
      %s262 = sadd.s32 %s261, 1
      %p265 = scmp.eq.s32.totalorder %s17, 23
      %p266 = scmp.ne.s32.totalorder %s261, %s263
      %p267 = scmp.eq.s32.totalorder %s17, 0
      %p268 = por %p266, %p267
      %p269 = scmp.ne.s32.totalorder %s261, %s263
      %p270 = scmp.eq.s32.totalorder %s22, 23
      %p271 = por %p269, %p270
      %p272 = scmp.ne.s32.totalorder %s263, %s264
      %p273 = scmp.eq.s32.totalorder %s22, 0
      %p274 = por %p272, %p273
      %p275 = scmp.ne.s32.totalorder %s263, %s264
      %p276 = scmp.eq.s32.totalorder %s23, 23
      %p277 = por %p275, %p276
      %p279 = scmp.ne.s32.totalorder %s264, %s278
      %p280 = scmp.eq.s32.totalorder %s23, 0
      %p281 = por %p279, %p280
      %p282 = scmp.le.s32.totalorder 1, %s17
      %p283 = scmp.lt.s32.totalorder %s17, 25
      %p284 = pnand %p282, %p283
      %p285 = pneg %p284
      // Predicated region
      $region9: #{pointnet_feat_two_stream.1} parent=5 // pred_check
        _
      $region10: #{pointnet_feat_two_stream.1} parent=5 // pred_check_branch
        %287 = sbr.rel (%p284) target = $region12
      $region11: #{pointnet_feat_two_stream.1} parent=5 // pred_region
        %s288 = ssub.s32 %s17, 1
        // Predicated region
        $region13: #{pointnet_feat_two_stream.1} parent=11 // pred_check
          %p289 = pneg %p85
        $region14: #{pointnet_feat_two_stream.1} parent=11 // pred_check_branch
          %291 = sbr.rel (%p289) target = $region16
        $region15: #{pointnet_feat_two_stream.1} parent=11 // pred_region
          _
        $region16: #{pointnet_feat_two_stream.1} parent=11 // pred_fallthru
          _
        // Predicated region
        $region17: #{pointnet_feat_two_stream.1} parent=11 // pred_check
          %p292 = pneg %p106
        $region18: #{pointnet_feat_two_stream.1} parent=11 // pred_check_branch
          %294 = sbr.rel (%p292) target = $region20
        $region19: #{pointnet_feat_two_stream.1} parent=11 // pred_region
          _
        $region20: #{pointnet_feat_two_stream.1} parent=11 // pred_fallthru
          _
        // Predicated region
        $region21: #{pointnet_feat_two_stream.1} parent=11 // pred_check
          %p295 = pneg %p127
        $region22: #{pointnet_feat_two_stream.1} parent=11 // pred_check_branch
          %297 = sbr.rel (%p295) target = $region24
        $region23: #{pointnet_feat_two_stream.1} parent=11 // pred_region
          _
        $region24: #{pointnet_feat_two_stream.1} parent=11 // pred_fallthru
          _
        // Predicated region
        $region25: #{pointnet_feat_two_stream.1} parent=11 // pred_check
          %p298 = pneg %p148
        $region26: #{pointnet_feat_two_stream.1} parent=11 // pred_check_branch
          %300 = sbr.rel (%p298) target = $region28
        $region27: #{pointnet_feat_two_stream.1} parent=11 // pred_region
          _
        $region28: #{pointnet_feat_two_stream.1} parent=11 // pred_fallthru
          _
        // Predicated region
        $region29: #{pointnet_feat_two_stream.1} parent=11 // pred_check
          %p301 = pneg %p169
        $region30: #{pointnet_feat_two_stream.1} parent=11 // pred_check_branch
          %303 = sbr.rel (%p301) target = $region32
        $region31: #{pointnet_feat_two_stream.1} parent=11 // pred_region
          _
        $region32: #{pointnet_feat_two_stream.1} parent=11 // pred_fallthru
          _
        // Predicated region
        $region33: #{pointnet_feat_two_stream.1} parent=11 // pred_check
          %p304 = pneg %p190
        $region34: #{pointnet_feat_two_stream.1} parent=11 // pred_check_branch
          %306 = sbr.rel (%p304) target = $region36
        $region35: #{pointnet_feat_two_stream.1} parent=11 // pred_region
          _
        $region36: #{pointnet_feat_two_stream.1} parent=11 // pred_fallthru
          _
        // Predicated region
        $region37: #{pointnet_feat_two_stream.1} parent=11 // pred_check
          %p307 = pneg %p211
        $region38: #{pointnet_feat_two_stream.1} parent=11 // pred_check_branch
          %309 = sbr.rel (%p307) target = $region40
        $region39: #{pointnet_feat_two_stream.1} parent=11 // pred_region
          _
        $region40: #{pointnet_feat_two_stream.1} parent=11 // pred_fallthru
          _
        // Predicated region
        $region41: #{pointnet_feat_two_stream.1} parent=11 // pred_check
          %p310 = pneg %p232
        $region42: #{pointnet_feat_two_stream.1} parent=11 // pred_check_branch
          %312 = sbr.rel (%p310) target = $region44
        $region43: #{pointnet_feat_two_stream.1} parent=11 // pred_region
          _
        $region44: #{pointnet_feat_two_stream.1} parent=11 // pred_fallthru
          _
        // Predicated region
        $region45: #{pointnet_feat_two_stream.1} parent=11 // pred_check
          %p313 = pneg %p253
        $region46: #{pointnet_feat_two_stream.1} parent=11 // pred_check_branch
          %315 = sbr.rel (%p313) target = $region48
        $region47: #{pointnet_feat_two_stream.1} parent=11 // pred_region
          _
        $region48: #{pointnet_feat_two_stream.1} parent=11 // pred_fallthru
          _
      $region12: #{pointnet_feat_two_stream.1} parent=5 // pred_fallthru
        _
      %p316 = scmp.lt.s32.totalorder %s17, 24
      // Predicated region
      $region49: #{pointnet_feat_two_stream.1} parent=5 // pred_check
        %p317 = pneg %p316
      $region50: #{pointnet_feat_two_stream.1} parent=5 // pred_check_branch
        %319 = sbr.rel (%p317) target = $region52
      $region51: #{pointnet_feat_two_stream.1} parent=5 // pred_region
        // Predicated region
        $region53: #{pointnet_feat_two_stream.1} parent=51 // pred_check
          %p320 = pneg %p58
        $region54: #{pointnet_feat_two_stream.1} parent=51 // pred_check_branch
          %322 = sbr.rel (%p320) target = $region56
        $region55: #{pointnet_feat_two_stream.1} parent=51 // pred_region
          %s323 = smul.u32 16, %s26
          %p324 = scmp.lt.s32.totalorder %s25, 1
          %s325 = scalar_select %p324, %s25, 1
          %p326 = scmp.lt.s32.totalorder %s323, 63
          %s327 = scalar_select %p326, %s323, 63
          %s328 = smul.addr %s325, 64
          %s329 = sadd.s32 %s327, %s328
          %s330 = smul.addr %s329, 4
          %s331 = scalar_lea.vmem %s0, %s330
          %s332 = smul.u32 16, %s26
        $region56: #{pointnet_feat_two_stream.1} parent=51 // pred_fallthru
          _
      $region52: #{pointnet_feat_two_stream.1} parent=5 // pred_fallthru
        _
      %p333 = scmp.le.s32.totalorder 1, %s17
      %p334 = scmp.lt.s32.totalorder %s17, 25
      %p335 = pnand %p333, %p334
      %p336 = pneg %p335
      // Predicated region
      $region57: #{pointnet_feat_two_stream.1} parent=5 // pred_check
        _
      $region58: #{pointnet_feat_two_stream.1} parent=5 // pred_check_branch
        %338 = sbr.rel (%p335) target = $region60
      $region59: #{pointnet_feat_two_stream.1} parent=5 // pred_region
        %s339 = ssub.s32 %s17, 1
        %s340 = smul.u32 16, %s29
        %p341 = scmp.lt.s32.totalorder %s28, 1
        %s342 = scalar_select %p341, %s28, 1
        %p343 = scmp.lt.s32.totalorder %s340, 63
        %s344 = scalar_select %p343, %s340, 63
        %s345 = smul.addr %s342, 64
        %s346 = sadd.s32 %s344, %s345
        %s347 = smul.addr %s346, 4
        %s348 = scalar_lea.vmem %s0, %s347
        %p349 = pneg %p64
        %p350 = pneg %p61
        %p351 = pneg %p85
        %p352 = pneg %p82
        %p353 = pneg %p106
        %p354 = pneg %p103
        %p355 = pneg %p127
        %p356 = pneg %p124
        %p357 = pneg %p148
        %p358 = pneg %p145
        %p359 = pneg %p169
        %p360 = pneg %p166
        %p361 = pneg %p190
        %p362 = pneg %p187
        %p363 = pneg %p211
        %p364 = pneg %p208
        %p365 = pneg %p232
        %p366 = pneg %p229
        %p367 = pneg %p253
        %p368 = pneg %p250
        %p369 = pneg %p274
        %p370 = pneg %p271
        %s371 = smul.u32 16, %s29
        %p372 = scmp.lt.s32.totalorder %s28, 1
        %s373 = scalar_select %p372, %s28, 1
        %p374 = scmp.lt.s32.totalorder %s371, 63
        %s375 = scalar_select %p374, %s371, 63
        %s376 = smul.addr %s373, 64
        %s377 = sadd.s32 %s375, %s376
        %s378 = smul.addr %s377, 4
        %s379 = scalar_lea.vmem %s0, %s378
        %s380 = smul.u32 16, %s29
        %p382 = scmp.eq.s32.totalorder %s27, 0
        %p383 = scmp.eq.s32.totalorder %s28, 0
        %p384 = scmp.eq.s32.totalorder %s29, 0
        %p385 = pnand %p383, %p384
        %p386 = pneg %p385
        %p387 = pnand %p382, %p386
        %p388 = pneg %p387
        // Predicated region
        $region61: #{pointnet_feat_two_stream.1} parent=59 // pred_check
          _
        $region62: #{pointnet_feat_two_stream.1} parent=59 // pred_check_branch
          %390 = sbr.rel (%p387) target = $region64
        $region63: #{pointnet_feat_two_stream.1} parent=59 // pred_region
          %vm391 = vcmask 516096
          %392 = vst.msk [vmem:[#allocation2] sm:$0x1] %vm391, 0.0
          %393 = vst.msk [vmem:[#allocation3] sm:$0x1] %vm391, 0.0
          %394 = vst [vmem:[#allocation4] sm:$0x1] 0.0
          %395 = vst [vmem:[#allocation5] sm:$0x1] 0.0
          %v396 = vlaneseq
          %vm397 = vcmp.ge.s32.totalorder %v396, 0
          %vm398 = vcmp.lt.s32.totalorder %v396, 256
          %vm399 = vmand %vm397, %vm398
          %400 = vst.msk [vmem:[#allocation6] sm:$0x3] %vm399, 0.0
          %401 = vst.msk [vmem:[#allocation7] sm:$0x3] %vm399, 0.0
          %402 = vst.msk [vmem:[#allocation8] sm:$0x3] %vm399, -inf
          %403 = vst.msk [vmem:[#allocation8 + $0x2] sm:$0x3] %vm399, -inf
          %404 = vst.msk [vmem:[#allocation9] sm:$0x3] %vm399, inf
          %405 = vst.msk [vmem:[#allocation9 + $0x2] sm:$0x3] %vm399, inf
        $region64: #{pointnet_feat_two_stream.1} parent=59 // pred_fallthru
          _
        %v406 = vld [vmem:[%s379] sm:$0xf]
        %v407 = vld [vmem:[%s379 + $0x4] sm:$0xf]
        %v408 = vld [vmem:[%s379 + $0x8] sm:$0xf]
        %v409 = vld [vmem:[%s379 + $0xc] sm:$0xf]
        %v410 = vld [vmem:[%s379 + $0x10] sm:$0xf]
        %v411 = vld [vmem:[%s379 + $0x14] sm:$0xf]
        %v412 = vld [vmem:[%s379 + $0x18] sm:$0xf]
        %v413 = vld [vmem:[%s379 + $0x1c] sm:$0xf]
        %v414 = vld [vmem:[%s379 + $0x20] sm:$0xf]
        %v415 = vld [vmem:[%s379 + $0x24] sm:$0xf]
        %v416 = vld [vmem:[%s379 + $0x28] sm:$0xf]
        %v417 = vld [vmem:[%s379 + $0x2c] sm:$0xf]
        %v418 = vld [vmem:[%s379 + $0x30] sm:$0xf]
        %v419 = vld [vmem:[%s379 + $0x34] sm:$0xf]
        %v420 = vld [vmem:[%s379 + $0x38] sm:$0xf]
        %v421 = vld [vmem:[%s379 + $0x3c] sm:$0xf]
        // Predicated region
        $region65: #{pointnet_feat_two_stream.1} parent=59 // pred_check
          %p422 = pneg %p382
        $region66: #{pointnet_feat_two_stream.1} parent=59 // pred_check_branch
          %424 = sbr.rel (%p422) target = $region68
        $region67: #{pointnet_feat_two_stream.1} parent=59 // pred_region
          %v425 = vld [vmem:[%s1] sm:$0xf]
          %v426 = vld [vmem:[%s1 + $0x4] sm:$0x3]
          %v443 = vunpack.c.l.b16 %v406
          %v444 = vunpack.c.l.b16 %v407
          %v445 = vunpack.c.l.b16 %v408
          %v446 = vunpack.c.l.b16 %v409
          %v447 = vunpack.c.l.b16 %v410
          %v448 = vunpack.c.l.b16 %v411
          %v449 = vunpack.c.l.b16 %v412
          %v450 = vunpack.c.l.b16 %v413
          %v451 = vunpack.c.l.b16 %v414
          %v452 = vunpack.c.l.b16 %v415
          %v453 = vunpack.c.l.b16 %v416
          %v454 = vunpack.c.l.b16 %v417
          %v455 = vunpack.c.l.b16 %v418
          %v456 = vunpack.c.l.b16 %v419
          %v457 = vunpack.c.l.b16 %v420
          %v458 = vunpack.c.l.b16 %v421
          %v459 = vpack.c.b16 %v444, %v443
          %v460 = vpack.c.b16 %v446, %v445
          %v461 = vpack.c.b16 %v448, %v447
          %v462 = vpack.c.b16 %v450, %v449
          %v463 = vpack.c.b16 %v452, %v451
          %v464 = vpack.c.b16 %v454, %v453
          %v465 = vpack.c.b16 %v456, %v455
          %v466 = vpack.c.b16 %v458, %v457
          %v469 = vunpack.c.l.b16 %v425
          %v470 = vunpack.c.l.b16 %v426
          %v471 = vpack.c.b16 %v470, %v469
          %vm472 = vcmask 97280
          %v474 = vsel %vm472, %v459, 0
          %v477 = vsel %vm472, %v460, 0
          %v480 = vsel %vm472, %v461, 0
          %v483 = vsel %vm472, %v462, 0
          %v486 = vsel %vm472, %v463, 0
          %v489 = vsel %vm472, %v464, 0
          %v492 = vsel %vm472, %v465, 0
          %v495 = vsel %vm472, %v466, 0
          %vm497 = vcmask 1045504
          %v499 = vsel %vm497, %v471, 0
          %501 = vmatprep.subr.bf16.mxu0 0
          %502 = vmatpush1.bf16.msra.mxu0 0
          %503 = vmatprep.subr.bf16.mxu0 0
          %504 = vmatpush1.bf16.msra.mxu0 0
          %505 = vmatprep.subr.bf16.mxu0 0
          %506 = vmatpush1.bf16.msra.mxu0 0
          %507 = vmatprep.subr.bf16.mxu0 0
          %508 = vmatpush1.bf16.msra.mxu0 0
          %509 = vmatprep.subr.bf16.mxu0 0
          %510 = vmatpush1.bf16.msra.mxu0 0
          %511 = vmatprep.subr.bf16.mxu0 0
          %512 = vmatpush1.bf16.msra.mxu0 0
          %513 = vmatprep.subr.bf16.mxu0 0
          %514 = vmatpush1.bf16.msra.mxu0 0
          %515 = vmatprep.subr.bf16.mxu0 0
          %516 = vmatpush1.bf16.msra.mxu0 %v499
          %517 = vmatprep.subr.bf16.mxu0 0
          %518 = vmatpush2.bf16.msra.mxu0 0
          %519 = vmatprep.subr.bf16.mxu0 0
          %520 = vmatpush2.bf16.msra.mxu0 0
          %521 = vmatprep.subr.bf16.mxu0 0
          %522 = vmatpush2.bf16.msra.mxu0 0
          %523 = vmatprep.subr.bf16.mxu0 0
          %524 = vmatpush2.bf16.msra.mxu0 0
          %525 = vmatprep.subr.bf16.mxu0 0
          %526 = vmatpush2.bf16.msra.mxu0 0
          %527 = vmatprep.subr.bf16.mxu0 0
          %528 = vmatpush2.bf16.msra.mxu0 0
          %529 = vmatprep.subr.bf16.mxu0 0
          %530 = vmatpush2.bf16.msra.mxu0 0
          %531 = vmatprep.subr.bf16.mxu0 0
          %532 = vmatpush2.bf16.msra.mxu0 0
          %533 = vmatprep.mubr.bf16.mxu0 0
          %534 = vmatmul.mubr.bf16.gmra.mxu0 %v474
          %v535 = vpop.f32.mrf.mxu0
          %v536 = vadd.f32 0.0, %v535
          %v537 = vpop.f32.mrf.mxu0
          %v538 = vpop.f32.mrf.mxu0
          %v539 = vadd.f32 0.0, %v538
          %v540 = vpop.f32.mrf.mxu0
          %541 = vmatprep.mubr.bf16.mxu0 0
          %542 = vmatmul.mubr.bf16.gmra.mxu0 %v477
          %v543 = vpop.f32.mrf.mxu0
          %v544 = vadd.f32 0.0, %v543
          %v545 = vpop.f32.mrf.mxu0
          %v546 = vpop.f32.mrf.mxu0
          %v547 = vadd.f32 0.0, %v546
          %v548 = vpop.f32.mrf.mxu0
          %549 = vmatprep.mubr.bf16.mxu0 0
          %550 = vmatmul.mubr.bf16.gmra.mxu0 %v480
          %v551 = vpop.f32.mrf.mxu0
          %v552 = vadd.f32 0.0, %v551
          %v553 = vpop.f32.mrf.mxu0
          %v554 = vpop.f32.mrf.mxu0
          %v555 = vadd.f32 0.0, %v554
          %v556 = vpop.f32.mrf.mxu0
          %557 = vmatprep.mubr.bf16.mxu0 0
          %558 = vmatmul.mubr.bf16.gmra.mxu0 %v483
          %v559 = vpop.f32.mrf.mxu0
          %v560 = vadd.f32 0.0, %v559
          %v561 = vpop.f32.mrf.mxu0
          %v562 = vpop.f32.mrf.mxu0
          %v563 = vadd.f32 0.0, %v562
          %v564 = vpop.f32.mrf.mxu0
          %565 = vmatprep.mubr.bf16.mxu0 0
          %566 = vmatmul.mubr.bf16.gmra.mxu0 %v486
          %v567 = vpop.f32.mrf.mxu0
          %v568 = vadd.f32 0.0, %v567
          %v569 = vpop.f32.mrf.mxu0
          %v570 = vpop.f32.mrf.mxu0
          %v571 = vadd.f32 0.0, %v570
          %v572 = vpop.f32.mrf.mxu0
          %573 = vmatprep.mubr.bf16.mxu0 0
          %574 = vmatmul.mubr.bf16.gmra.mxu0 %v489
          %v575 = vpop.f32.mrf.mxu0
          %v576 = vadd.f32 0.0, %v575
          %v577 = vpop.f32.mrf.mxu0
          %v578 = vpop.f32.mrf.mxu0
          %v579 = vadd.f32 0.0, %v578
          %v580 = vpop.f32.mrf.mxu0
          %581 = vmatprep.mubr.bf16.mxu0 0
          %582 = vmatmul.mubr.bf16.gmra.mxu0 %v492
          %v583 = vpop.f32.mrf.mxu0
          %v584 = vadd.f32 0.0, %v583
          %v585 = vpop.f32.mrf.mxu0
          %v586 = vpop.f32.mrf.mxu0
          %v587 = vadd.f32 0.0, %v586
          %v588 = vpop.f32.mrf.mxu0
          %589 = vmatprep.mubr.bf16.mxu0 0
          %590 = vmatmul.mubr.bf16.gmra.mxu0 %v495
          %v591 = vpop.f32.mrf.mxu0
          %v592 = vadd.f32 0.0, %v591
          %v593 = vpop.f32.mrf.mxu0
          %v594 = vpop.f32.mrf.mxu0
          %v595 = vadd.f32 0.0, %v594
          %v596 = vpop.f32.mrf.mxu0
          %597 = vdwg.mxu0
          %v598 = vld [vmem:[#allocation2] sm:$0x1]
          %vm599 = vcmask 523264
          %v600 = vsel %vm599, %v536, 0.0
          %v601 = vsel %vm599, %v539, 0.0
          %v602 = vadd.f32 %v600, %v601
          %v603 = vsel %vm599, %v544, 0.0
          %v604 = vadd.f32 %v602, %v603
          %v605 = vsel %vm599, %v547, 0.0
          %v606 = vadd.f32 %v604, %v605
          %v607 = vsel %vm599, %v552, 0.0
          %v608 = vadd.f32 %v606, %v607
          %v609 = vsel %vm599, %v555, 0.0
          %v610 = vadd.f32 %v608, %v609
          %v611 = vsel %vm599, %v560, 0.0
          %v612 = vadd.f32 %v610, %v611
          %v613 = vsel %vm599, %v563, 0.0
          %v614 = vadd.f32 %v612, %v613
          %v615 = vsel %vm599, %v568, 0.0
          %v616 = vadd.f32 %v614, %v615
          %v617 = vsel %vm599, %v571, 0.0
          %v618 = vadd.f32 %v616, %v617
          %v619 = vsel %vm599, %v576, 0.0
          %v620 = vadd.f32 %v618, %v619
          %v621 = vsel %vm599, %v579, 0.0
          %v622 = vadd.f32 %v620, %v621
          %v623 = vsel %vm599, %v584, 0.0
          %v624 = vadd.f32 %v622, %v623
          %v625 = vsel %vm599, %v587, 0.0
          %v626 = vadd.f32 %v624, %v625
          %v627 = vsel %vm599, %v592, 0.0
          %v628 = vadd.f32 %v626, %v627
          %v629 = vsel %vm599, %v595, 0.0
          %v630 = vadd.f32 %v628, %v629
          %v631 = vrot.slane %v630, 4
          %v632 = vadd.f32 %v630, %v631
          %v633 = vrot.slane %v632, 2
          %v634 = vadd.f32 %v632, %v633
          %v635 = vrot.slane %v634, 1
          %v636 = vadd.f32 %v634, %v635
          %v637 = vadd.f32 %v598, %v636
          %vm638 = vcmask 516096
          %639 = vst.msk [vmem:[#allocation2] sm:$0x1] %vm638, %v637
          %v640 = vld [vmem:[#allocation3] sm:$0x1]
          %v641 = vmul.f32 %v536, %v536
          %v642 = vmul.f32 %v539, %v539
          %v643 = vmul.f32 %v544, %v544
          %v644 = vmul.f32 %v547, %v547
          %v645 = vmul.f32 %v552, %v552
          %v646 = vmul.f32 %v555, %v555
          %v647 = vmul.f32 %v560, %v560
          %v648 = vmul.f32 %v563, %v563
          %v649 = vmul.f32 %v568, %v568
          %v650 = vmul.f32 %v571, %v571
          %v651 = vmul.f32 %v576, %v576
          %v652 = vmul.f32 %v579, %v579
          %v653 = vmul.f32 %v584, %v584
          %v654 = vmul.f32 %v587, %v587
          %v655 = vmul.f32 %v592, %v592
          %v656 = vmul.f32 %v595, %v595
          %v657 = vsel %vm599, %v641, 0.0
          %v658 = vsel %vm599, %v642, 0.0
          %v659 = vadd.f32 %v657, %v658
          %v660 = vsel %vm599, %v643, 0.0
          %v661 = vadd.f32 %v659, %v660
          %v662 = vsel %vm599, %v644, 0.0
          %v663 = vadd.f32 %v661, %v662
          %v664 = vsel %vm599, %v645, 0.0
          %v665 = vadd.f32 %v663, %v664
          %v666 = vsel %vm599, %v646, 0.0
          %v667 = vadd.f32 %v665, %v666
          %v668 = vsel %vm599, %v647, 0.0
          %v669 = vadd.f32 %v667, %v668
          %v670 = vsel %vm599, %v648, 0.0
          %v671 = vadd.f32 %v669, %v670
          %v672 = vsel %vm599, %v649, 0.0
          %v673 = vadd.f32 %v671, %v672
          %v674 = vsel %vm599, %v650, 0.0
          %v675 = vadd.f32 %v673, %v674
          %v676 = vsel %vm599, %v651, 0.0
          %v677 = vadd.f32 %v675, %v676
          %v678 = vsel %vm599, %v652, 0.0
          %v679 = vadd.f32 %v677, %v678
          %v680 = vsel %vm599, %v653, 0.0
          %v681 = vadd.f32 %v679, %v680
          %v682 = vsel %vm599, %v654, 0.0
          %v683 = vadd.f32 %v681, %v682
          %v684 = vsel %vm599, %v655, 0.0
          %v685 = vadd.f32 %v683, %v684
          %v686 = vsel %vm599, %v656, 0.0
          %v687 = vadd.f32 %v685, %v686
          %v688 = vrot.slane %v687, 4
          %v689 = vadd.f32 %v687, %v688
          %v690 = vrot.slane %v689, 2
          %v691 = vadd.f32 %v689, %v690
          %v692 = vrot.slane %v691, 1
          %v693 = vadd.f32 %v691, %v692
          %v694 = vadd.f32 %v640, %v693
          %695 = vst.msk [vmem:[#allocation3] sm:$0x1] %vm638, %v694
        $region68: #{pointnet_feat_two_stream.1} parent=59 // pred_fallthru
          _
        %p696 = scmp.eq.s32.totalorder %s27, 1
        // Predicated region
        $region69: #{pointnet_feat_two_stream.1} parent=59 // pred_check
          %p697 = pneg %p696
        $region70: #{pointnet_feat_two_stream.1} parent=59 // pred_check_branch
          %699 = sbr.rel (%p697) target = $region72
        $region71: #{pointnet_feat_two_stream.1} parent=59 // pred_region
          %v700 = vld [vmem:[#allocation2] sm:$0x1]
          %v701 = vmul.f32 %v700, 0.0009765625
          %v702 = vld [vmem:[#allocation3] sm:$0x1]
          %v703 = vmul.f32 %v702, 0.0009765625
          %v704 = vmul.f32 %v701, %v701
          %v705 = vsub.f32 %v703, %v704
          %v706 = vmax.f32 %v705, 0.0
          %v707 = vadd.f32 %v706, 1e-05
          %v708 = vrsqrt.pop %v707
          %v709 = vld [vmem:[%s2] sm:$0x1]
          %v710 = vmul.f32 %v708, %v709
          %v711 = vld [vmem:[%s3] sm:$0x1]
          %v712 = vmul.f32 %v701, %v710
          %v713 = vsub.f32 %v711, %v712
          %v714 = vld [vmem:[%s1] sm:$0xf]
          %v715 = vld [vmem:[%s1 + $0x4] sm:$0x3]
          %v716 = vunpack.c.l.bf16 %v714
          %v717 = vunpack.c.l.bf16 %v715
          %v719 = vlaneseq
          %v720 = vshrl.u32 %v719, 7
          %v721 = vsub.s32 0, %v720
          %v722 = vrot.slane %v710, %v721
          %v724 = vmul.f32 %v716, %v722
          %v725 = vmul.f32 %v717, %v722
          %v726 = vpack.c.bf16 %v725, %v724
          %v728 = vlaneseq
          %v729 = vshrl.u32 %v728, 7
          %v730 = vsub.s32 0, %v729
          %v731 = vrot.slane %v713, %v730
          %v749 = vunpack.c.l.b16 %v406
          %v750 = vunpack.c.l.b16 %v407
          %v751 = vunpack.c.l.b16 %v408
          %v752 = vunpack.c.l.b16 %v409
          %v753 = vunpack.c.l.b16 %v410
          %v754 = vunpack.c.l.b16 %v411
          %v755 = vunpack.c.l.b16 %v412
          %v756 = vunpack.c.l.b16 %v413
          %v757 = vunpack.c.l.b16 %v414
          %v758 = vunpack.c.l.b16 %v415
          %v759 = vunpack.c.l.b16 %v416
          %v760 = vunpack.c.l.b16 %v417
          %v761 = vunpack.c.l.b16 %v418
          %v762 = vunpack.c.l.b16 %v419
          %v763 = vunpack.c.l.b16 %v420
          %v764 = vunpack.c.l.b16 %v421
          %v765 = vpack.c.b16 %v750, %v749
          %v766 = vpack.c.b16 %v752, %v751
          %v767 = vpack.c.b16 %v754, %v753
          %v768 = vpack.c.b16 %v756, %v755
          %v769 = vpack.c.b16 %v758, %v757
          %v770 = vpack.c.b16 %v760, %v759
          %v771 = vpack.c.b16 %v762, %v761
          %v772 = vpack.c.b16 %v764, %v763
          %vm773 = vcmask 97280
          %v775 = vsel %vm773, %v765, 0
          %v778 = vsel %vm773, %v766, 0
          %v781 = vsel %vm773, %v767, 0
          %v784 = vsel %vm773, %v768, 0
          %v787 = vsel %vm773, %v769, 0
          %v790 = vsel %vm773, %v770, 0
          %v793 = vsel %vm773, %v771, 0
          %v796 = vsel %vm773, %v772, 0
          %vm798 = vcmask 1045504
          %v800 = vsel %vm798, %v726, 0
          %802 = vmatprep.subr.bf16.mxu0 0
          %803 = vmatpush1.bf16.msra.mxu0 0
          %804 = vmatprep.subr.bf16.mxu0 0
          %805 = vmatpush1.bf16.msra.mxu0 0
          %806 = vmatprep.subr.bf16.mxu0 0
          %807 = vmatpush1.bf16.msra.mxu0 0
          %808 = vmatprep.subr.bf16.mxu0 0
          %809 = vmatpush1.bf16.msra.mxu0 0
          %810 = vmatprep.subr.bf16.mxu0 0
          %811 = vmatpush1.bf16.msra.mxu0 0
          %812 = vmatprep.subr.bf16.mxu0 0
          %813 = vmatpush1.bf16.msra.mxu0 0
          %814 = vmatprep.subr.bf16.mxu0 0
          %815 = vmatpush1.bf16.msra.mxu0 0
          %816 = vmatprep.subr.bf16.mxu0 0
          %817 = vmatpush1.bf16.msra.mxu0 %v800
          %818 = vmatprep.subr.bf16.mxu0 0
          %819 = vmatpush2.bf16.msra.mxu0 0
          %820 = vmatprep.subr.bf16.mxu0 0
          %821 = vmatpush2.bf16.msra.mxu0 0
          %822 = vmatprep.subr.bf16.mxu0 0
          %823 = vmatpush2.bf16.msra.mxu0 0
          %824 = vmatprep.subr.bf16.mxu0 0
          %825 = vmatpush2.bf16.msra.mxu0 0
          %826 = vmatprep.subr.bf16.mxu0 0
          %827 = vmatpush2.bf16.msra.mxu0 0
          %828 = vmatprep.subr.bf16.mxu0 0
          %829 = vmatpush2.bf16.msra.mxu0 0
          %830 = vmatprep.subr.bf16.mxu0 0
          %831 = vmatpush2.bf16.msra.mxu0 0
          %832 = vmatprep.subr.bf16.mxu0 0
          %833 = vmatpush2.bf16.msra.mxu0 0
          %834 = vmatprep.mubr.bf16.mxu0 0
          %835 = vmatmul.mubr.bf16.gmra.mxu0 %v775
          %v836 = vpop.f32.mrf.mxu0
          %v837 = vadd.f32 %v731, %v836
          %v838 = vpop.f32.mrf.mxu0
          %v839 = vpop.f32.mrf.mxu0
          %v840 = vadd.f32 %v731, %v839
          %v841 = vpop.f32.mrf.mxu0
          %842 = vmatprep.mubr.bf16.mxu0 0
          %843 = vmatmul.mubr.bf16.gmra.mxu0 %v778
          %v844 = vpop.f32.mrf.mxu0
          %v845 = vadd.f32 %v731, %v844
          %v846 = vpop.f32.mrf.mxu0
          %v847 = vpop.f32.mrf.mxu0
          %v848 = vadd.f32 %v731, %v847
          %v849 = vpop.f32.mrf.mxu0
          %850 = vmatprep.mubr.bf16.mxu0 0
          %851 = vmatmul.mubr.bf16.gmra.mxu0 %v781
          %v852 = vpop.f32.mrf.mxu0
          %v853 = vadd.f32 %v731, %v852
          %v854 = vpop.f32.mrf.mxu0
          %v855 = vpop.f32.mrf.mxu0
          %v856 = vadd.f32 %v731, %v855
          %v857 = vpop.f32.mrf.mxu0
          %858 = vmatprep.mubr.bf16.mxu0 0
          %859 = vmatmul.mubr.bf16.gmra.mxu0 %v784
          %v860 = vpop.f32.mrf.mxu0
          %v861 = vadd.f32 %v731, %v860
          %v862 = vpop.f32.mrf.mxu0
          %v863 = vpop.f32.mrf.mxu0
          %v864 = vadd.f32 %v731, %v863
          %v865 = vpop.f32.mrf.mxu0
          %866 = vmatprep.mubr.bf16.mxu0 0
          %867 = vmatmul.mubr.bf16.gmra.mxu0 %v787
          %v868 = vpop.f32.mrf.mxu0
          %v869 = vadd.f32 %v731, %v868
          %v870 = vpop.f32.mrf.mxu0
          %v871 = vpop.f32.mrf.mxu0
          %v872 = vadd.f32 %v731, %v871
          %v873 = vpop.f32.mrf.mxu0
          %874 = vmatprep.mubr.bf16.mxu0 0
          %875 = vmatmul.mubr.bf16.gmra.mxu0 %v790
          %v876 = vpop.f32.mrf.mxu0
          %v877 = vadd.f32 %v731, %v876
          %v878 = vpop.f32.mrf.mxu0
          %v879 = vpop.f32.mrf.mxu0
          %v880 = vadd.f32 %v731, %v879
          %v881 = vpop.f32.mrf.mxu0
          %882 = vmatprep.mubr.bf16.mxu0 0
          %883 = vmatmul.mubr.bf16.gmra.mxu0 %v793
          %v884 = vpop.f32.mrf.mxu0
          %v885 = vadd.f32 %v731, %v884
          %v886 = vpop.f32.mrf.mxu0
          %v887 = vpop.f32.mrf.mxu0
          %v888 = vadd.f32 %v731, %v887
          %v889 = vpop.f32.mrf.mxu0
          %890 = vmatprep.mubr.bf16.mxu0 0
          %891 = vmatmul.mubr.bf16.gmra.mxu0 %v796
          %v892 = vpop.f32.mrf.mxu0
          %v893 = vadd.f32 %v731, %v892
          %v894 = vpop.f32.mrf.mxu0
          %v895 = vpop.f32.mrf.mxu0
          %v896 = vadd.f32 %v731, %v895
          %v897 = vpop.f32.mrf.mxu0
          %898 = vdwg.mxu0
          %v899 = vmax.f32 %v837, 0.0
          %v900 = vmax.f32 %v840, 0.0
          %v901 = vmax.f32 %v845, 0.0
          %v902 = vmax.f32 %v848, 0.0
          %v903 = vmax.f32 %v853, 0.0
          %v904 = vmax.f32 %v856, 0.0
          %v905 = vmax.f32 %v861, 0.0
          %v906 = vmax.f32 %v864, 0.0
          %v907 = vmax.f32 %v869, 0.0
          %v908 = vmax.f32 %v872, 0.0
          %v909 = vmax.f32 %v877, 0.0
          %v910 = vmax.f32 %v880, 0.0
          %v911 = vmax.f32 %v885, 0.0
          %v912 = vmax.f32 %v888, 0.0
          %v913 = vmax.f32 %v893, 0.0
          %v914 = vmax.f32 %v896, 0.0
          %v915 = vpack.c.bf16 %v900, %v899
          %v916 = vpack.c.bf16 %v902, %v901
          %v917 = vpack.c.bf16 %v904, %v903
          %v918 = vpack.c.bf16 %v906, %v905
          %v919 = vpack.c.bf16 %v908, %v907
          %v920 = vpack.c.bf16 %v910, %v909
          %v921 = vpack.c.bf16 %v912, %v911
          %v922 = vpack.c.bf16 %v914, %v913
          %v923 = vld [vmem:[%s4] sm:$0xf]
          %v924 = vld [vmem:[%s4 + $0x4] sm:$0xf]
          %v925 = vld [vmem:[%s4 + $0x8] sm:$0xf]
          %v926 = vld [vmem:[%s4 + $0xc] sm:$0xf]
          %v927 = vld [vmem:[%s4 + $0x10] sm:$0xf]
          %v928 = vld [vmem:[%s4 + $0x14] sm:$0xf]
          %v929 = vld [vmem:[%s4 + $0x18] sm:$0xf]
          %v930 = vld [vmem:[%s4 + $0x1c] sm:$0xf]
          %v939 = vunpack.c.l.b16 %v923
          %v940 = vunpack.c.l.b16 %v924
          %v941 = vunpack.c.l.b16 %v925
          %v942 = vunpack.c.l.b16 %v926
          %v943 = vunpack.c.l.b16 %v927
          %v944 = vunpack.c.l.b16 %v928
          %v945 = vunpack.c.l.b16 %v929
          %v946 = vunpack.c.l.b16 %v930
          %v947 = vpack.c.b16 %v940, %v939
          %v948 = vpack.c.b16 %v942, %v941
          %v949 = vpack.c.b16 %v944, %v943
          %v950 = vpack.c.b16 %v946, %v945
          %vm955 = vcmask 523264
          %v957 = vsel %vm955, %v915, 0
          %v960 = vsel %vm955, %v916, 0
          %v963 = vsel %vm955, %v917, 0
          %v966 = vsel %vm955, %v918, 0
          %v969 = vsel %vm955, %v919, 0
          %v972 = vsel %vm955, %v920, 0
          %v975 = vsel %vm955, %v921, 0
          %v978 = vsel %vm955, %v922, 0
          %980 = vmatprep.subr.bf16.mxu0 0
          %981 = vmatpush1.bf16.msra.mxu0 0
          %982 = vmatprep.subr.bf16.mxu0 0
          %983 = vmatpush1.bf16.msra.mxu0 0
          %984 = vmatprep.subr.bf16.mxu0 0
          %985 = vmatpush1.bf16.msra.mxu0 0
          %986 = vmatprep.subr.bf16.mxu0 0
          %987 = vmatpush1.bf16.msra.mxu0 0
          %988 = vmatprep.subr.bf16.mxu0 0
          %989 = vmatpush1.bf16.msra.mxu0 %v950
          %990 = vmatprep.subr.bf16.mxu0 0
          %991 = vmatpush1.bf16.msra.mxu0 %v949
          %992 = vmatprep.subr.bf16.mxu0 0
          %993 = vmatpush1.bf16.msra.mxu0 %v948
          %994 = vmatprep.subr.bf16.mxu0 0
          %995 = vmatpush1.bf16.msra.mxu0 %v947
          %996 = vmatprep.subr.bf16.mxu0 0
          %997 = vmatpush2.bf16.msra.mxu0 0
          %998 = vmatprep.subr.bf16.mxu0 0
          %999 = vmatpush2.bf16.msra.mxu0 0
          %1000 = vmatprep.subr.bf16.mxu0 0
          %1001 = vmatpush2.bf16.msra.mxu0 0
          %1002 = vmatprep.subr.bf16.mxu0 0
          %1003 = vmatpush2.bf16.msra.mxu0 0
          %1004 = vmatprep.subr.bf16.mxu0 0
          %1005 = vmatpush2.bf16.msra.mxu0 0
          %1006 = vmatprep.subr.bf16.mxu0 0
          %1007 = vmatpush2.bf16.msra.mxu0 0
          %1008 = vmatprep.subr.bf16.mxu0 0
          %1009 = vmatpush2.bf16.msra.mxu0 0
          %1010 = vmatprep.subr.bf16.mxu0 0
          %1011 = vmatpush2.bf16.msra.mxu0 0
          %1012 = vmatprep.mubr.bf16.mxu0 0
          %1013 = vmatmul.mubr.bf16.gmra.mxu0 %v957
          %v1014 = vpop.f32.mrf.mxu0
          %v1015 = vadd.f32 0.0, %v1014
          %v1016 = vpop.f32.mrf.mxu0
          %v1017 = vpop.f32.mrf.mxu0
          %v1018 = vadd.f32 0.0, %v1017
          %v1019 = vpop.f32.mrf.mxu0
          %1020 = vmatprep.mubr.bf16.mxu0 0
          %1021 = vmatmul.mubr.bf16.gmra.mxu0 %v960
          %v1022 = vpop.f32.mrf.mxu0
          %v1023 = vadd.f32 0.0, %v1022
          %v1024 = vpop.f32.mrf.mxu0
          %v1025 = vpop.f32.mrf.mxu0
          %v1026 = vadd.f32 0.0, %v1025
          %v1027 = vpop.f32.mrf.mxu0
          %1028 = vmatprep.mubr.bf16.mxu0 0
          %1029 = vmatmul.mubr.bf16.gmra.mxu0 %v963
          %v1030 = vpop.f32.mrf.mxu0
          %v1031 = vadd.f32 0.0, %v1030
          %v1032 = vpop.f32.mrf.mxu0
          %v1033 = vpop.f32.mrf.mxu0
          %v1034 = vadd.f32 0.0, %v1033
          %v1035 = vpop.f32.mrf.mxu0
          %1036 = vmatprep.mubr.bf16.mxu0 0
          %1037 = vmatmul.mubr.bf16.gmra.mxu0 %v966
          %v1038 = vpop.f32.mrf.mxu0
          %v1039 = vadd.f32 0.0, %v1038
          %v1040 = vpop.f32.mrf.mxu0
          %v1041 = vpop.f32.mrf.mxu0
          %v1042 = vadd.f32 0.0, %v1041
          %v1043 = vpop.f32.mrf.mxu0
          %1044 = vmatprep.mubr.bf16.mxu0 0
          %1045 = vmatmul.mubr.bf16.gmra.mxu0 %v969
          %v1046 = vpop.f32.mrf.mxu0
          %v1047 = vadd.f32 0.0, %v1046
          %v1048 = vpop.f32.mrf.mxu0
          %v1049 = vpop.f32.mrf.mxu0
          %v1050 = vadd.f32 0.0, %v1049
          %v1051 = vpop.f32.mrf.mxu0
          %1052 = vmatprep.mubr.bf16.mxu0 0
          %1053 = vmatmul.mubr.bf16.gmra.mxu0 %v972
          %v1054 = vpop.f32.mrf.mxu0
          %v1055 = vadd.f32 0.0, %v1054
          %v1056 = vpop.f32.mrf.mxu0
          %v1057 = vpop.f32.mrf.mxu0
          %v1058 = vadd.f32 0.0, %v1057
          %v1059 = vpop.f32.mrf.mxu0
          %1060 = vmatprep.mubr.bf16.mxu0 0
          %1061 = vmatmul.mubr.bf16.gmra.mxu0 %v975
          %v1062 = vpop.f32.mrf.mxu0
          %v1063 = vadd.f32 0.0, %v1062
          %v1064 = vpop.f32.mrf.mxu0
          %v1065 = vpop.f32.mrf.mxu0
          %v1066 = vadd.f32 0.0, %v1065
          %v1067 = vpop.f32.mrf.mxu0
          %1068 = vmatprep.mubr.bf16.mxu0 0
          %1069 = vmatmul.mubr.bf16.gmra.mxu0 %v978
          %v1070 = vpop.f32.mrf.mxu0
          %v1071 = vadd.f32 0.0, %v1070
          %v1072 = vpop.f32.mrf.mxu0
          %v1073 = vpop.f32.mrf.mxu0
          %v1074 = vadd.f32 0.0, %v1073
          %v1075 = vpop.f32.mrf.mxu0
          %1076 = vdwg.mxu0
          %v1077 = vld [vmem:[#allocation4] sm:$0x1]
          %v1078 = vadd.f32 %v1015, %v1018
          %v1079 = vadd.f32 %v1078, %v1023
          %v1080 = vadd.f32 %v1079, %v1026
          %v1081 = vadd.f32 %v1080, %v1031
          %v1082 = vadd.f32 %v1081, %v1034
          %v1083 = vadd.f32 %v1082, %v1039
          %v1084 = vadd.f32 %v1083, %v1042
          %v1085 = vadd.f32 %v1084, %v1047
          %v1086 = vadd.f32 %v1085, %v1050
          %v1087 = vadd.f32 %v1086, %v1055
          %v1088 = vadd.f32 %v1087, %v1058
          %v1089 = vadd.f32 %v1088, %v1063
          %v1090 = vadd.f32 %v1089, %v1066
          %v1091 = vadd.f32 %v1090, %v1071
          %v1092 = vadd.f32 %v1091, %v1074
          %v1093 = vrot.slane %v1092, 4
          %v1094 = vadd.f32 %v1092, %v1093
          %v1095 = vrot.slane %v1094, 2
          %v1096 = vadd.f32 %v1094, %v1095
          %v1097 = vrot.slane %v1096, 1
          %v1098 = vadd.f32 %v1096, %v1097
          %v1099 = vadd.f32 %v1077, %v1098
          %1100 = vst [vmem:[#allocation4] sm:$0x1] %v1099
          %v1101 = vld [vmem:[#allocation5] sm:$0x1]
          %v1102 = vmul.f32 %v1015, %v1015
          %v1103 = vmul.f32 %v1018, %v1018
          %v1104 = vmul.f32 %v1023, %v1023
          %v1105 = vmul.f32 %v1026, %v1026
          %v1106 = vmul.f32 %v1031, %v1031
          %v1107 = vmul.f32 %v1034, %v1034
          %v1108 = vmul.f32 %v1039, %v1039
          %v1109 = vmul.f32 %v1042, %v1042
          %v1110 = vmul.f32 %v1047, %v1047
          %v1111 = vmul.f32 %v1050, %v1050
          %v1112 = vmul.f32 %v1055, %v1055
          %v1113 = vmul.f32 %v1058, %v1058
          %v1114 = vmul.f32 %v1063, %v1063
          %v1115 = vmul.f32 %v1066, %v1066
          %v1116 = vmul.f32 %v1071, %v1071
          %v1117 = vmul.f32 %v1074, %v1074
          %v1118 = vadd.f32 %v1102, %v1103
          %v1119 = vadd.f32 %v1118, %v1104
          %v1120 = vadd.f32 %v1119, %v1105
          %v1121 = vadd.f32 %v1120, %v1106
          %v1122 = vadd.f32 %v1121, %v1107
          %v1123 = vadd.f32 %v1122, %v1108
          %v1124 = vadd.f32 %v1123, %v1109
          %v1125 = vadd.f32 %v1124, %v1110
          %v1126 = vadd.f32 %v1125, %v1111
          %v1127 = vadd.f32 %v1126, %v1112
          %v1128 = vadd.f32 %v1127, %v1113
          %v1129 = vadd.f32 %v1128, %v1114
          %v1130 = vadd.f32 %v1129, %v1115
          %v1131 = vadd.f32 %v1130, %v1116
          %v1132 = vadd.f32 %v1131, %v1117
          %v1133 = vrot.slane %v1132, 4
          %v1134 = vadd.f32 %v1132, %v1133
          %v1135 = vrot.slane %v1134, 2
          %v1136 = vadd.f32 %v1134, %v1135
          %v1137 = vrot.slane %v1136, 1
          %v1138 = vadd.f32 %v1136, %v1137
          %v1139 = vadd.f32 %v1101, %v1138
          %1140 = vst [vmem:[#allocation5] sm:$0x1] %v1139
        $region72: #{pointnet_feat_two_stream.1} parent=59 // pred_fallthru
          _
        %p1141 = scmp.eq.s32.totalorder %s27, 2
        // Predicated region
        $region73: #{pointnet_feat_two_stream.1} parent=59 // pred_check
          %p1142 = pneg %p1141
        $region74: #{pointnet_feat_two_stream.1} parent=59 // pred_check_branch
          %1144 = sbr.rel (%p1142) target = $region76
        $region75: #{pointnet_feat_two_stream.1} parent=59 // pred_region
          %v1145 = vld [vmem:[#allocation2] sm:$0x1]
          %v1146 = vmul.f32 %v1145, 0.0009765625
          %v1147 = vld [vmem:[#allocation3] sm:$0x1]
          %v1148 = vmul.f32 %v1147, 0.0009765625
          %v1149 = vmul.f32 %v1146, %v1146
          %v1150 = vsub.f32 %v1148, %v1149
          %v1151 = vmax.f32 %v1150, 0.0
          %v1152 = vadd.f32 %v1151, 1e-05
          %v1153 = vrsqrt.pop %v1152
          %v1154 = vld [vmem:[%s2] sm:$0x1]
          %v1155 = vmul.f32 %v1153, %v1154
          %v1156 = vld [vmem:[%s3] sm:$0x1]
          %v1157 = vmul.f32 %v1146, %v1155
          %v1158 = vsub.f32 %v1156, %v1157
          %v1159 = vld [vmem:[#allocation4] sm:$0x1]
          %v1160 = vmul.f32 %v1159, 0.0009765625
          %v1161 = vld [vmem:[#allocation5] sm:$0x1]
          %v1162 = vmul.f32 %v1161, 0.0009765625
          %v1163 = vmul.f32 %v1160, %v1160
          %v1164 = vsub.f32 %v1162, %v1163
          %v1165 = vmax.f32 %v1164, 0.0
          %v1166 = vadd.f32 %v1165, 1e-05
          %v1167 = vrsqrt.pop %v1166
          %v1168 = vld [vmem:[%s5] sm:$0x1]
          %v1169 = vmul.f32 %v1167, %v1168
          %v1170 = vld [vmem:[%s6] sm:$0x1]
          %v1171 = vmul.f32 %v1160, %v1169
          %v1172 = vsub.f32 %v1170, %v1171
          %v1173 = vld [vmem:[%s1] sm:$0xf]
          %v1174 = vld [vmem:[%s1 + $0x4] sm:$0x3]
          %v1175 = vunpack.c.l.bf16 %v1173
          %v1176 = vunpack.c.l.bf16 %v1174
          %v1178 = vlaneseq
          %v1179 = vshrl.u32 %v1178, 7
          %v1180 = vsub.s32 0, %v1179
          %v1181 = vrot.slane %v1155, %v1180
          %v1183 = vmul.f32 %v1175, %v1181
          %v1184 = vmul.f32 %v1176, %v1181
          %v1185 = vpack.c.bf16 %v1184, %v1183
          %v1187 = vlaneseq
          %v1188 = vshrl.u32 %v1187, 7
          %v1189 = vsub.s32 0, %v1188
          %v1190 = vrot.slane %v1158, %v1189
          %v1208 = vunpack.c.l.b16 %v406
          %v1209 = vunpack.c.l.b16 %v407
          %v1210 = vunpack.c.l.b16 %v408
          %v1211 = vunpack.c.l.b16 %v409
          %v1212 = vunpack.c.l.b16 %v410
          %v1213 = vunpack.c.l.b16 %v411
          %v1214 = vunpack.c.l.b16 %v412
          %v1215 = vunpack.c.l.b16 %v413
          %v1216 = vunpack.c.l.b16 %v414
          %v1217 = vunpack.c.l.b16 %v415
          %v1218 = vunpack.c.l.b16 %v416
          %v1219 = vunpack.c.l.b16 %v417
          %v1220 = vunpack.c.l.b16 %v418
          %v1221 = vunpack.c.l.b16 %v419
          %v1222 = vunpack.c.l.b16 %v420
          %v1223 = vunpack.c.l.b16 %v421
          %v1224 = vpack.c.b16 %v1209, %v1208
          %v1225 = vpack.c.b16 %v1211, %v1210
          %v1226 = vpack.c.b16 %v1213, %v1212
          %v1227 = vpack.c.b16 %v1215, %v1214
          %v1228 = vpack.c.b16 %v1217, %v1216
          %v1229 = vpack.c.b16 %v1219, %v1218
          %v1230 = vpack.c.b16 %v1221, %v1220
          %v1231 = vpack.c.b16 %v1223, %v1222
          %vm1232 = vcmask 97280
          %v1234 = vsel %vm1232, %v1224, 0
          %v1237 = vsel %vm1232, %v1225, 0
          %v1240 = vsel %vm1232, %v1226, 0
          %v1243 = vsel %vm1232, %v1227, 0
          %v1246 = vsel %vm1232, %v1228, 0
          %v1249 = vsel %vm1232, %v1229, 0
          %v1252 = vsel %vm1232, %v1230, 0
          %v1255 = vsel %vm1232, %v1231, 0
          %vm1257 = vcmask 1045504
          %v1259 = vsel %vm1257, %v1185, 0
          %1261 = vmatprep.subr.bf16.mxu0 0
          %1262 = vmatpush1.bf16.msra.mxu0 0
          %1263 = vmatprep.subr.bf16.mxu0 0
          %1264 = vmatpush1.bf16.msra.mxu0 0
          %1265 = vmatprep.subr.bf16.mxu0 0
          %1266 = vmatpush1.bf16.msra.mxu0 0
          %1267 = vmatprep.subr.bf16.mxu0 0
          %1268 = vmatpush1.bf16.msra.mxu0 0
          %1269 = vmatprep.subr.bf16.mxu0 0
          %1270 = vmatpush1.bf16.msra.mxu0 0
          %1271 = vmatprep.subr.bf16.mxu0 0
          %1272 = vmatpush1.bf16.msra.mxu0 0
          %1273 = vmatprep.subr.bf16.mxu0 0
          %1274 = vmatpush1.bf16.msra.mxu0 0
          %1275 = vmatprep.subr.bf16.mxu0 0
          %1276 = vmatpush1.bf16.msra.mxu0 %v1259
          %1277 = vmatprep.subr.bf16.mxu0 0
          %1278 = vmatpush2.bf16.msra.mxu0 0
          %1279 = vmatprep.subr.bf16.mxu0 0
          %1280 = vmatpush2.bf16.msra.mxu0 0
          %1281 = vmatprep.subr.bf16.mxu0 0
          %1282 = vmatpush2.bf16.msra.mxu0 0
          %1283 = vmatprep.subr.bf16.mxu0 0
          %1284 = vmatpush2.bf16.msra.mxu0 0
          %1285 = vmatprep.subr.bf16.mxu0 0
          %1286 = vmatpush2.bf16.msra.mxu0 0
          %1287 = vmatprep.subr.bf16.mxu0 0
          %1288 = vmatpush2.bf16.msra.mxu0 0
          %1289 = vmatprep.subr.bf16.mxu0 0
          %1290 = vmatpush2.bf16.msra.mxu0 0
          %1291 = vmatprep.subr.bf16.mxu0 0
          %1292 = vmatpush2.bf16.msra.mxu0 0
          %1293 = vmatprep.mubr.bf16.mxu0 0
          %1294 = vmatmul.mubr.bf16.gmra.mxu0 %v1234
          %v1295 = vpop.f32.mrf.mxu0
          %v1296 = vadd.f32 %v1190, %v1295
          %v1297 = vpop.f32.mrf.mxu0
          %v1298 = vpop.f32.mrf.mxu0
          %v1299 = vadd.f32 %v1190, %v1298
          %v1300 = vpop.f32.mrf.mxu0
          %1301 = vmatprep.mubr.bf16.mxu0 0
          %1302 = vmatmul.mubr.bf16.gmra.mxu0 %v1237
          %v1303 = vpop.f32.mrf.mxu0
          %v1304 = vadd.f32 %v1190, %v1303
          %v1305 = vpop.f32.mrf.mxu0
          %v1306 = vpop.f32.mrf.mxu0
          %v1307 = vadd.f32 %v1190, %v1306
          %v1308 = vpop.f32.mrf.mxu0
          %1309 = vmatprep.mubr.bf16.mxu0 0
          %1310 = vmatmul.mubr.bf16.gmra.mxu0 %v1240
          %v1311 = vpop.f32.mrf.mxu0
          %v1312 = vadd.f32 %v1190, %v1311
          %v1313 = vpop.f32.mrf.mxu0
          %v1314 = vpop.f32.mrf.mxu0
          %v1315 = vadd.f32 %v1190, %v1314
          %v1316 = vpop.f32.mrf.mxu0
          %1317 = vmatprep.mubr.bf16.mxu0 0
          %1318 = vmatmul.mubr.bf16.gmra.mxu0 %v1243
          %v1319 = vpop.f32.mrf.mxu0
          %v1320 = vadd.f32 %v1190, %v1319
          %v1321 = vpop.f32.mrf.mxu0
          %v1322 = vpop.f32.mrf.mxu0
          %v1323 = vadd.f32 %v1190, %v1322
          %v1324 = vpop.f32.mrf.mxu0
          %1325 = vmatprep.mubr.bf16.mxu0 0
          %1326 = vmatmul.mubr.bf16.gmra.mxu0 %v1246
          %v1327 = vpop.f32.mrf.mxu0
          %v1328 = vadd.f32 %v1190, %v1327
          %v1329 = vpop.f32.mrf.mxu0
          %v1330 = vpop.f32.mrf.mxu0
          %v1331 = vadd.f32 %v1190, %v1330
          %v1332 = vpop.f32.mrf.mxu0
          %1333 = vmatprep.mubr.bf16.mxu0 0
          %1334 = vmatmul.mubr.bf16.gmra.mxu0 %v1249
          %v1335 = vpop.f32.mrf.mxu0
          %v1336 = vadd.f32 %v1190, %v1335
          %v1337 = vpop.f32.mrf.mxu0
          %v1338 = vpop.f32.mrf.mxu0
          %v1339 = vadd.f32 %v1190, %v1338
          %v1340 = vpop.f32.mrf.mxu0
          %1341 = vmatprep.mubr.bf16.mxu0 0
          %1342 = vmatmul.mubr.bf16.gmra.mxu0 %v1252
          %v1343 = vpop.f32.mrf.mxu0
          %v1344 = vadd.f32 %v1190, %v1343
          %v1345 = vpop.f32.mrf.mxu0
          %v1346 = vpop.f32.mrf.mxu0
          %v1347 = vadd.f32 %v1190, %v1346
          %v1348 = vpop.f32.mrf.mxu0
          %1349 = vmatprep.mubr.bf16.mxu0 0
          %1350 = vmatmul.mubr.bf16.gmra.mxu0 %v1255
          %v1351 = vpop.f32.mrf.mxu0
          %v1352 = vadd.f32 %v1190, %v1351
          %v1353 = vpop.f32.mrf.mxu0
          %v1354 = vpop.f32.mrf.mxu0
          %v1355 = vadd.f32 %v1190, %v1354
          %v1356 = vpop.f32.mrf.mxu0
          %1357 = vdwg.mxu0
          %v1358 = vmax.f32 %v1296, 0.0
          %v1359 = vmax.f32 %v1299, 0.0
          %v1360 = vmax.f32 %v1304, 0.0
          %v1361 = vmax.f32 %v1307, 0.0
          %v1362 = vmax.f32 %v1312, 0.0
          %v1363 = vmax.f32 %v1315, 0.0
          %v1364 = vmax.f32 %v1320, 0.0
          %v1365 = vmax.f32 %v1323, 0.0
          %v1366 = vmax.f32 %v1328, 0.0
          %v1367 = vmax.f32 %v1331, 0.0
          %v1368 = vmax.f32 %v1336, 0.0
          %v1369 = vmax.f32 %v1339, 0.0
          %v1370 = vmax.f32 %v1344, 0.0
          %v1371 = vmax.f32 %v1347, 0.0
          %v1372 = vmax.f32 %v1352, 0.0
          %v1373 = vmax.f32 %v1355, 0.0
          %v1374 = vpack.c.bf16 %v1359, %v1358
          %v1375 = vpack.c.bf16 %v1361, %v1360
          %v1376 = vpack.c.bf16 %v1363, %v1362
          %v1377 = vpack.c.bf16 %v1365, %v1364
          %v1378 = vpack.c.bf16 %v1367, %v1366
          %v1379 = vpack.c.bf16 %v1369, %v1368
          %v1380 = vpack.c.bf16 %v1371, %v1370
          %v1381 = vpack.c.bf16 %v1373, %v1372
          %v1382 = vld [vmem:[%s4] sm:$0xf]
          %v1383 = vld [vmem:[%s4 + $0x4] sm:$0xf]
          %v1384 = vld [vmem:[%s4 + $0x8] sm:$0xf]
          %v1385 = vld [vmem:[%s4 + $0xc] sm:$0xf]
          %v1386 = vld [vmem:[%s4 + $0x10] sm:$0xf]
          %v1387 = vld [vmem:[%s4 + $0x14] sm:$0xf]
          %v1388 = vld [vmem:[%s4 + $0x18] sm:$0xf]
          %v1389 = vld [vmem:[%s4 + $0x1c] sm:$0xf]
          %v1390 = vunpack.c.l.bf16 %v1382
          %v1391 = vunpack.c.l.bf16 %v1383
          %v1392 = vunpack.c.l.bf16 %v1384
          %v1393 = vunpack.c.l.bf16 %v1385
          %v1394 = vunpack.c.l.bf16 %v1386
          %v1395 = vunpack.c.l.bf16 %v1387
          %v1396 = vunpack.c.l.bf16 %v1388
          %v1397 = vunpack.c.l.bf16 %v1389
          %v1399 = vlaneseq
          %v1400 = vshrl.u32 %v1399, 7
          %v1401 = vsub.s32 0, %v1400
          %v1402 = vrot.slane %v1169, %v1401
          %v1404 = vmul.f32 %v1390, %v1402
          %v1405 = vmul.f32 %v1391, %v1402
          %v1406 = vmul.f32 %v1392, %v1402
          %v1407 = vmul.f32 %v1393, %v1402
          %v1408 = vmul.f32 %v1394, %v1402
          %v1409 = vmul.f32 %v1395, %v1402
          %v1410 = vmul.f32 %v1396, %v1402
          %v1411 = vmul.f32 %v1397, %v1402
          %v1412 = vpack.c.bf16 %v1405, %v1404
          %v1413 = vpack.c.bf16 %v1407, %v1406
          %v1414 = vpack.c.bf16 %v1409, %v1408
          %v1415 = vpack.c.bf16 %v1411, %v1410
          %v1417 = vlaneseq
          %v1418 = vshrl.u32 %v1417, 7
          %v1419 = vsub.s32 0, %v1418
          %v1420 = vrot.slane %v1172, %v1419
          %vm1422 = vcmask 523264
          %v1424 = vsel %vm1422, %v1374, 0
          %v1427 = vsel %vm1422, %v1375, 0
          %v1430 = vsel %vm1422, %v1376, 0
          %v1433 = vsel %vm1422, %v1377, 0
          %v1436 = vsel %vm1422, %v1378, 0
          %v1439 = vsel %vm1422, %v1379, 0
          %v1442 = vsel %vm1422, %v1380, 0
          %v1445 = vsel %vm1422, %v1381, 0
          %1447 = vmatprep.subr.bf16.mxu0 0
          %1448 = vmatpush1.bf16.msra.mxu0 0
          %1449 = vmatprep.subr.bf16.mxu0 0
          %1450 = vmatpush1.bf16.msra.mxu0 0
          %1451 = vmatprep.subr.bf16.mxu0 0
          %1452 = vmatpush1.bf16.msra.mxu0 0
          %1453 = vmatprep.subr.bf16.mxu0 0
          %1454 = vmatpush1.bf16.msra.mxu0 0
          %1455 = vmatprep.subr.bf16.mxu0 0
          %1456 = vmatpush1.bf16.msra.mxu0 %v1415
          %1457 = vmatprep.subr.bf16.mxu0 0
          %1458 = vmatpush1.bf16.msra.mxu0 %v1414
          %1459 = vmatprep.subr.bf16.mxu0 0
          %1460 = vmatpush1.bf16.msra.mxu0 %v1413
          %1461 = vmatprep.subr.bf16.mxu0 0
          %1462 = vmatpush1.bf16.msra.mxu0 %v1412
          %1463 = vmatprep.subr.bf16.mxu0 0
          %1464 = vmatpush2.bf16.msra.mxu0 0
          %1465 = vmatprep.subr.bf16.mxu0 0
          %1466 = vmatpush2.bf16.msra.mxu0 0
          %1467 = vmatprep.subr.bf16.mxu0 0
          %1468 = vmatpush2.bf16.msra.mxu0 0
          %1469 = vmatprep.subr.bf16.mxu0 0
          %1470 = vmatpush2.bf16.msra.mxu0 0
          %1471 = vmatprep.subr.bf16.mxu0 0
          %1472 = vmatpush2.bf16.msra.mxu0 0
          %1473 = vmatprep.subr.bf16.mxu0 0
          %1474 = vmatpush2.bf16.msra.mxu0 0
          %1475 = vmatprep.subr.bf16.mxu0 0
          %1476 = vmatpush2.bf16.msra.mxu0 0
          %1477 = vmatprep.subr.bf16.mxu0 0
          %1478 = vmatpush2.bf16.msra.mxu0 0
          %1479 = vmatprep.mubr.bf16.mxu0 0
          %1480 = vmatmul.mubr.bf16.gmra.mxu0 %v1424
          %v1481 = vpop.f32.mrf.mxu0
          %v1482 = vadd.f32 %v1420, %v1481
          %v1483 = vpop.f32.mrf.mxu0
          %v1484 = vpop.f32.mrf.mxu0
          %v1485 = vadd.f32 %v1420, %v1484
          %v1486 = vpop.f32.mrf.mxu0
          %1487 = vmatprep.mubr.bf16.mxu0 0
          %1488 = vmatmul.mubr.bf16.gmra.mxu0 %v1427
          %v1489 = vpop.f32.mrf.mxu0
          %v1490 = vadd.f32 %v1420, %v1489
          %v1491 = vpop.f32.mrf.mxu0
          %v1492 = vpop.f32.mrf.mxu0
          %v1493 = vadd.f32 %v1420, %v1492
          %v1494 = vpop.f32.mrf.mxu0
          %1495 = vmatprep.mubr.bf16.mxu0 0
          %1496 = vmatmul.mubr.bf16.gmra.mxu0 %v1430
          %v1497 = vpop.f32.mrf.mxu0
          %v1498 = vadd.f32 %v1420, %v1497
          %v1499 = vpop.f32.mrf.mxu0
          %v1500 = vpop.f32.mrf.mxu0
          %v1501 = vadd.f32 %v1420, %v1500
          %v1502 = vpop.f32.mrf.mxu0
          %1503 = vmatprep.mubr.bf16.mxu0 0
          %1504 = vmatmul.mubr.bf16.gmra.mxu0 %v1433
          %v1505 = vpop.f32.mrf.mxu0
          %v1506 = vadd.f32 %v1420, %v1505
          %v1507 = vpop.f32.mrf.mxu0
          %v1508 = vpop.f32.mrf.mxu0
          %v1509 = vadd.f32 %v1420, %v1508
          %v1510 = vpop.f32.mrf.mxu0
          %1511 = vmatprep.mubr.bf16.mxu0 0
          %1512 = vmatmul.mubr.bf16.gmra.mxu0 %v1436
          %v1513 = vpop.f32.mrf.mxu0
          %v1514 = vadd.f32 %v1420, %v1513
          %v1515 = vpop.f32.mrf.mxu0
          %v1516 = vpop.f32.mrf.mxu0
          %v1517 = vadd.f32 %v1420, %v1516
          %v1518 = vpop.f32.mrf.mxu0
          %1519 = vmatprep.mubr.bf16.mxu0 0
          %1520 = vmatmul.mubr.bf16.gmra.mxu0 %v1439
          %v1521 = vpop.f32.mrf.mxu0
          %v1522 = vadd.f32 %v1420, %v1521
          %v1523 = vpop.f32.mrf.mxu0
          %v1524 = vpop.f32.mrf.mxu0
          %v1525 = vadd.f32 %v1420, %v1524
          %v1526 = vpop.f32.mrf.mxu0
          %1527 = vmatprep.mubr.bf16.mxu0 0
          %1528 = vmatmul.mubr.bf16.gmra.mxu0 %v1442
          %v1529 = vpop.f32.mrf.mxu0
          %v1530 = vadd.f32 %v1420, %v1529
          %v1531 = vpop.f32.mrf.mxu0
          %v1532 = vpop.f32.mrf.mxu0
          %v1533 = vadd.f32 %v1420, %v1532
          %v1534 = vpop.f32.mrf.mxu0
          %1535 = vmatprep.mubr.bf16.mxu0 0
          %1536 = vmatmul.mubr.bf16.gmra.mxu0 %v1445
          %v1537 = vpop.f32.mrf.mxu0
          %v1538 = vadd.f32 %v1420, %v1537
          %v1539 = vpop.f32.mrf.mxu0
          %v1540 = vpop.f32.mrf.mxu0
          %v1541 = vadd.f32 %v1420, %v1540
          %v1542 = vpop.f32.mrf.mxu0
          %1543 = vdwg.mxu0
          %v1544 = vmax.f32 %v1482, 0.0
          %v1545 = vmax.f32 %v1485, 0.0
          %v1546 = vmax.f32 %v1490, 0.0
          %v1547 = vmax.f32 %v1493, 0.0
          %v1548 = vmax.f32 %v1498, 0.0
          %v1549 = vmax.f32 %v1501, 0.0
          %v1550 = vmax.f32 %v1506, 0.0
          %v1551 = vmax.f32 %v1509, 0.0
          %v1552 = vmax.f32 %v1514, 0.0
          %v1553 = vmax.f32 %v1517, 0.0
          %v1554 = vmax.f32 %v1522, 0.0
          %v1555 = vmax.f32 %v1525, 0.0
          %v1556 = vmax.f32 %v1530, 0.0
          %v1557 = vmax.f32 %v1533, 0.0
          %v1558 = vmax.f32 %v1538, 0.0
          %v1559 = vmax.f32 %v1541, 0.0
          %v1560 = vpack.c.bf16 %v1545, %v1544
          %v1561 = vpack.c.bf16 %v1547, %v1546
          %v1562 = vpack.c.bf16 %v1549, %v1548
          %v1563 = vpack.c.bf16 %v1551, %v1550
          %v1564 = vpack.c.bf16 %v1553, %v1552
          %v1565 = vpack.c.bf16 %v1555, %v1554
          %v1566 = vpack.c.bf16 %v1557, %v1556
          %v1567 = vpack.c.bf16 %v1559, %v1558
          %v1568 = vld [vmem:[%s7] sm:$0xff]
          %v1569 = vld [vmem:[%s7 + $0x8] sm:$0xff]
          %v1570 = vld [vmem:[%s7 + $0x10] sm:$0xff]
          %v1571 = vld [vmem:[%s7 + $0x18] sm:$0xff]
          %v1572 = vld [vmem:[%s7 + $0x20] sm:$0xff]
          %v1573 = vld [vmem:[%s7 + $0x28] sm:$0xff]
          %v1574 = vld [vmem:[%s7 + $0x30] sm:$0xff]
          %v1575 = vld [vmem:[%s7 + $0x38] sm:$0xff]
          %v1576 = vld [vmem:[%s7 + $0x40] sm:$0xff]
          %v1577 = vld [vmem:[%s7 + $0x48] sm:$0xff]
          %v1578 = vld [vmem:[%s7 + $0x50] sm:$0xff]
          %v1579 = vld [vmem:[%s7 + $0x58] sm:$0xff]
          %v1580 = vld [vmem:[%s7 + $0x60] sm:$0xff]
          %v1581 = vld [vmem:[%s7 + $0x68] sm:$0xff]
          %v1582 = vld [vmem:[%s7 + $0x70] sm:$0xff]
          %v1583 = vld [vmem:[%s7 + $0x78] sm:$0xff]
          %v1600 = vunpack.c.l.b16 %v1568
          %v1601 = vunpack.c.h.b16 %v1568
          %v1602 = vunpack.c.l.b16 %v1569
          %v1603 = vunpack.c.h.b16 %v1569
          %v1604 = vunpack.c.l.b16 %v1570
          %v1605 = vunpack.c.h.b16 %v1570
          %v1606 = vunpack.c.l.b16 %v1571
          %v1607 = vunpack.c.h.b16 %v1571
          %v1608 = vunpack.c.l.b16 %v1572
          %v1609 = vunpack.c.h.b16 %v1572
          %v1610 = vunpack.c.l.b16 %v1573
          %v1611 = vunpack.c.h.b16 %v1573
          %v1612 = vunpack.c.l.b16 %v1574
          %v1613 = vunpack.c.h.b16 %v1574
          %v1614 = vunpack.c.l.b16 %v1575
          %v1615 = vunpack.c.h.b16 %v1575
          %v1616 = vunpack.c.l.b16 %v1576
          %v1617 = vunpack.c.h.b16 %v1576
          %v1618 = vunpack.c.l.b16 %v1577
          %v1619 = vunpack.c.h.b16 %v1577
          %v1620 = vunpack.c.l.b16 %v1578
          %v1621 = vunpack.c.h.b16 %v1578
          %v1622 = vunpack.c.l.b16 %v1579
          %v1623 = vunpack.c.h.b16 %v1579
          %v1624 = vunpack.c.l.b16 %v1580
          %v1625 = vunpack.c.h.b16 %v1580
          %v1626 = vunpack.c.l.b16 %v1581
          %v1627 = vunpack.c.h.b16 %v1581
          %v1628 = vunpack.c.l.b16 %v1582
          %v1629 = vunpack.c.h.b16 %v1582
          %v1630 = vunpack.c.l.b16 %v1583
          %v1631 = vunpack.c.h.b16 %v1583
          %v1632 = vpack.c.b16 %v1602, %v1600
          %v1633 = vpack.c.b16 %v1603, %v1601
          %v1634 = vpack.c.b16 %v1606, %v1604
          %v1635 = vpack.c.b16 %v1607, %v1605
          %v1636 = vpack.c.b16 %v1610, %v1608
          %v1637 = vpack.c.b16 %v1611, %v1609
          %v1638 = vpack.c.b16 %v1614, %v1612
          %v1639 = vpack.c.b16 %v1615, %v1613
          %v1640 = vpack.c.b16 %v1618, %v1616
          %v1641 = vpack.c.b16 %v1619, %v1617
          %v1642 = vpack.c.b16 %v1622, %v1620
          %v1643 = vpack.c.b16 %v1623, %v1621
          %v1644 = vpack.c.b16 %v1626, %v1624
          %v1645 = vpack.c.b16 %v1627, %v1625
          %v1646 = vpack.c.b16 %v1630, %v1628
          %v1647 = vpack.c.b16 %v1631, %v1629
          %1664 = vmatprep.subr.bf16.mxu0 %v1647
          %1665 = vmatpush1.bf16.msra.mxu0 %v1646
          %1666 = vmatprep.subr.bf16.mxu0 %v1645
          %1667 = vmatpush1.bf16.msra.mxu0 %v1644
          %1668 = vmatprep.subr.bf16.mxu0 %v1643
          %1669 = vmatpush1.bf16.msra.mxu0 %v1642
          %1670 = vmatprep.subr.bf16.mxu0 %v1641
          %1671 = vmatpush1.bf16.msra.mxu0 %v1640
          %1672 = vmatprep.subr.bf16.mxu0 %v1639
          %1673 = vmatpush1.bf16.msra.mxu0 %v1638
          %1674 = vmatprep.subr.bf16.mxu0 %v1637
          %1675 = vmatpush1.bf16.msra.mxu0 %v1636
          %1676 = vmatprep.subr.bf16.mxu0 %v1635
          %1677 = vmatpush1.bf16.msra.mxu0 %v1634
          %1678 = vmatprep.subr.bf16.mxu0 %v1633
          %1679 = vmatpush1.bf16.msra.mxu0 %v1632
          %1680 = vmatprep.subr.bf16.mxu0 0
          %1681 = vmatpush2.bf16.msra.mxu0 0
          %1682 = vmatprep.subr.bf16.mxu0 0
          %1683 = vmatpush2.bf16.msra.mxu0 0
          %1684 = vmatprep.subr.bf16.mxu0 0
          %1685 = vmatpush2.bf16.msra.mxu0 0
          %1686 = vmatprep.subr.bf16.mxu0 0
          %1687 = vmatpush2.bf16.msra.mxu0 0
          %1688 = vmatprep.subr.bf16.mxu0 0
          %1689 = vmatpush2.bf16.msra.mxu0 0
          %1690 = vmatprep.subr.bf16.mxu0 0
          %1691 = vmatpush2.bf16.msra.mxu0 0
          %1692 = vmatprep.subr.bf16.mxu0 0
          %1693 = vmatpush2.bf16.msra.mxu0 0
          %1694 = vmatprep.subr.bf16.mxu0 0
          %1695 = vmatpush2.bf16.msra.mxu0 0
          %1696 = vmatprep.mubr.bf16.mxu0 0
          %1697 = vmatmul.mubr.bf16.gmra.mxu0 %v1560
          %v1698 = vpop.f32.mrf.mxu0
          %v1699 = vadd.f32 0.0, %v1698
          %v1700 = vpop.f32.mrf.mxu0
          %v1701 = vadd.f32 0.0, %v1700
          %v1702 = vpop.f32.mrf.mxu0
          %v1703 = vadd.f32 0.0, %v1702
          %v1704 = vpop.f32.mrf.mxu0
          %v1705 = vadd.f32 0.0, %v1704
          %1706 = vmatprep.mubr.bf16.mxu0 0
          %1707 = vmatmul.mubr.bf16.gmra.mxu0 %v1561
          %v1708 = vpop.f32.mrf.mxu0
          %v1709 = vadd.f32 0.0, %v1708
          %v1710 = vpop.f32.mrf.mxu0
          %v1711 = vadd.f32 0.0, %v1710
          %v1712 = vpop.f32.mrf.mxu0
          %v1713 = vadd.f32 0.0, %v1712
          %v1714 = vpop.f32.mrf.mxu0
          %v1715 = vadd.f32 0.0, %v1714
          %1716 = vmatprep.mubr.bf16.mxu0 0
          %1717 = vmatmul.mubr.bf16.gmra.mxu0 %v1562
          %v1718 = vpop.f32.mrf.mxu0
          %v1719 = vadd.f32 0.0, %v1718
          %v1720 = vpop.f32.mrf.mxu0
          %v1721 = vadd.f32 0.0, %v1720
          %v1722 = vpop.f32.mrf.mxu0
          %v1723 = vadd.f32 0.0, %v1722
          %v1724 = vpop.f32.mrf.mxu0
          %v1725 = vadd.f32 0.0, %v1724
          %1726 = vmatprep.mubr.bf16.mxu0 0
          %1727 = vmatmul.mubr.bf16.gmra.mxu0 %v1563
          %v1728 = vpop.f32.mrf.mxu0
          %v1729 = vadd.f32 0.0, %v1728
          %v1730 = vpop.f32.mrf.mxu0
          %v1731 = vadd.f32 0.0, %v1730
          %v1732 = vpop.f32.mrf.mxu0
          %v1733 = vadd.f32 0.0, %v1732
          %v1734 = vpop.f32.mrf.mxu0
          %v1735 = vadd.f32 0.0, %v1734
          %1736 = vmatprep.mubr.bf16.mxu0 0
          %1737 = vmatmul.mubr.bf16.gmra.mxu0 %v1564
          %v1738 = vpop.f32.mrf.mxu0
          %v1739 = vadd.f32 0.0, %v1738
          %v1740 = vpop.f32.mrf.mxu0
          %v1741 = vadd.f32 0.0, %v1740
          %v1742 = vpop.f32.mrf.mxu0
          %v1743 = vadd.f32 0.0, %v1742
          %v1744 = vpop.f32.mrf.mxu0
          %v1745 = vadd.f32 0.0, %v1744
          %1746 = vmatprep.mubr.bf16.mxu0 0
          %1747 = vmatmul.mubr.bf16.gmra.mxu0 %v1565
          %v1748 = vpop.f32.mrf.mxu0
          %v1749 = vadd.f32 0.0, %v1748
          %v1750 = vpop.f32.mrf.mxu0
          %v1751 = vadd.f32 0.0, %v1750
          %v1752 = vpop.f32.mrf.mxu0
          %v1753 = vadd.f32 0.0, %v1752
          %v1754 = vpop.f32.mrf.mxu0
          %v1755 = vadd.f32 0.0, %v1754
          %1756 = vmatprep.mubr.bf16.mxu0 0
          %1757 = vmatmul.mubr.bf16.gmra.mxu0 %v1566
          %v1758 = vpop.f32.mrf.mxu0
          %v1759 = vadd.f32 0.0, %v1758
          %v1760 = vpop.f32.mrf.mxu0
          %v1761 = vadd.f32 0.0, %v1760
          %v1762 = vpop.f32.mrf.mxu0
          %v1763 = vadd.f32 0.0, %v1762
          %v1764 = vpop.f32.mrf.mxu0
          %v1765 = vadd.f32 0.0, %v1764
          %1766 = vmatprep.mubr.bf16.mxu0 0
          %1767 = vmatmul.mubr.bf16.gmra.mxu0 %v1567
          %v1768 = vpop.f32.mrf.mxu0
          %v1769 = vadd.f32 0.0, %v1768
          %v1770 = vpop.f32.mrf.mxu0
          %v1771 = vadd.f32 0.0, %v1770
          %v1772 = vpop.f32.mrf.mxu0
          %v1773 = vadd.f32 0.0, %v1772
          %v1774 = vpop.f32.mrf.mxu0
          %v1775 = vadd.f32 0.0, %v1774
          %1776 = vdwg.mxu0
          %v1777 = vld [vmem:[#allocation6] sm:$0x3]
          %v1778 = vadd.f32 %v1699, %v1703
          %v1779 = vadd.f32 %v1778, %v1709
          %v1780 = vadd.f32 %v1779, %v1713
          %v1781 = vadd.f32 %v1780, %v1719
          %v1782 = vadd.f32 %v1781, %v1723
          %v1783 = vadd.f32 %v1782, %v1729
          %v1784 = vadd.f32 %v1783, %v1733
          %v1785 = vadd.f32 %v1784, %v1739
          %v1786 = vadd.f32 %v1785, %v1743
          %v1787 = vadd.f32 %v1786, %v1749
          %v1788 = vadd.f32 %v1787, %v1753
          %v1789 = vadd.f32 %v1788, %v1759
          %v1790 = vadd.f32 %v1789, %v1763
          %v1791 = vadd.f32 %v1790, %v1769
          %v1792 = vadd.f32 %v1791, %v1773
          %v1793 = vrot.slane %v1792, 4
          %v1794 = vadd.f32 %v1792, %v1793
          %v1795 = vrot.slane %v1794, 2
          %v1796 = vadd.f32 %v1794, %v1795
          %v1797 = vrot.slane %v1796, 1
          %v1798 = vadd.f32 %v1796, %v1797
          %v1799 = vadd.f32 %v1701, %v1705
          %v1800 = vadd.f32 %v1799, %v1711
          %v1801 = vadd.f32 %v1800, %v1715
          %v1802 = vadd.f32 %v1801, %v1721
          %v1803 = vadd.f32 %v1802, %v1725
          %v1804 = vadd.f32 %v1803, %v1731
          %v1805 = vadd.f32 %v1804, %v1735
          %v1806 = vadd.f32 %v1805, %v1741
          %v1807 = vadd.f32 %v1806, %v1745
          %v1808 = vadd.f32 %v1807, %v1751
          %v1809 = vadd.f32 %v1808, %v1755
          %v1810 = vadd.f32 %v1809, %v1761
          %v1811 = vadd.f32 %v1810, %v1765
          %v1812 = vadd.f32 %v1811, %v1771
          %v1813 = vadd.f32 %v1812, %v1775
          %v1814 = vrot.slane %v1813, 4
          %v1815 = vadd.f32 %v1813, %v1814
          %v1816 = vrot.slane %v1815, 2
          %v1817 = vadd.f32 %v1815, %v1816
          %v1818 = vrot.slane %v1817, 1
          %v1819 = vadd.f32 %v1817, %v1818
          %v1822 = vcombine.low %v1798, %v1819
          %v1824 = vunpack.c.l.s4 1966171168
          %v1825 = vunpack.c.0.s8 %v1824
          %v1826 = vlaneseq
          %v1827 = vshrl.u32 %v1826, 7
          %v1828 = vsub.s32 %v1825, %v1827
          %v1829 = vrot.slane %v1822, %v1828
          %v1831 = vunpack.c.l.s4 1966171168
          %v1832 = vunpack.c.0.s8 %v1831
          %v1833 = vlaneseq
          %v1834 = vshrl.u32 %v1833, 7
          %v1835 = vsub.s32 %v1832, %v1834
          %v1836 = vrot.slane %v1829, %v1835
          %v1838 = vadd.f32 %v1777, %v1836
          %v1839 = vlaneseq
          %vm1840 = vcmp.ge.s32.totalorder %v1839, 0
          %vm1841 = vcmp.lt.s32.totalorder %v1839, 256
          %vm1842 = vmand %vm1840, %vm1841
          %1843 = vst.msk [vmem:[#allocation6] sm:$0x3] %vm1842, %v1838
          %v1844 = vld [vmem:[#allocation7] sm:$0x3]
          %v1845 = vmul.f32 %v1699, %v1699
          %v1846 = vmul.f32 %v1701, %v1701
          %v1847 = vmul.f32 %v1703, %v1703
          %v1848 = vmul.f32 %v1705, %v1705
          %v1849 = vmul.f32 %v1709, %v1709
          %v1850 = vmul.f32 %v1711, %v1711
          %v1851 = vmul.f32 %v1713, %v1713
          %v1852 = vmul.f32 %v1715, %v1715
          %v1853 = vmul.f32 %v1719, %v1719
          %v1854 = vmul.f32 %v1721, %v1721
          %v1855 = vmul.f32 %v1723, %v1723
          %v1856 = vmul.f32 %v1725, %v1725
          %v1857 = vmul.f32 %v1729, %v1729
          %v1858 = vmul.f32 %v1731, %v1731
          %v1859 = vmul.f32 %v1733, %v1733
          %v1860 = vmul.f32 %v1735, %v1735
          %v1861 = vmul.f32 %v1739, %v1739
          %v1862 = vmul.f32 %v1741, %v1741
          %v1863 = vmul.f32 %v1743, %v1743
          %v1864 = vmul.f32 %v1745, %v1745
          %v1865 = vmul.f32 %v1749, %v1749
          %v1866 = vmul.f32 %v1751, %v1751
          %v1867 = vmul.f32 %v1753, %v1753
          %v1868 = vmul.f32 %v1755, %v1755
          %v1869 = vmul.f32 %v1759, %v1759
          %v1870 = vmul.f32 %v1761, %v1761
          %v1871 = vmul.f32 %v1763, %v1763
          %v1872 = vmul.f32 %v1765, %v1765
          %v1873 = vmul.f32 %v1769, %v1769
          %v1874 = vmul.f32 %v1771, %v1771
          %v1875 = vmul.f32 %v1773, %v1773
          %v1876 = vmul.f32 %v1775, %v1775
          %v1877 = vadd.f32 %v1845, %v1847
          %v1878 = vadd.f32 %v1877, %v1849
          %v1879 = vadd.f32 %v1878, %v1851
          %v1880 = vadd.f32 %v1879, %v1853
          %v1881 = vadd.f32 %v1880, %v1855
          %v1882 = vadd.f32 %v1881, %v1857
          %v1883 = vadd.f32 %v1882, %v1859
          %v1884 = vadd.f32 %v1883, %v1861
          %v1885 = vadd.f32 %v1884, %v1863
          %v1886 = vadd.f32 %v1885, %v1865
          %v1887 = vadd.f32 %v1886, %v1867
          %v1888 = vadd.f32 %v1887, %v1869
          %v1889 = vadd.f32 %v1888, %v1871
          %v1890 = vadd.f32 %v1889, %v1873
          %v1891 = vadd.f32 %v1890, %v1875
          %v1892 = vrot.slane %v1891, 4
          %v1893 = vadd.f32 %v1891, %v1892
          %v1894 = vrot.slane %v1893, 2
          %v1895 = vadd.f32 %v1893, %v1894
          %v1896 = vrot.slane %v1895, 1
          %v1897 = vadd.f32 %v1895, %v1896
          %v1898 = vadd.f32 %v1846, %v1848
          %v1899 = vadd.f32 %v1898, %v1850
          %v1900 = vadd.f32 %v1899, %v1852
          %v1901 = vadd.f32 %v1900, %v1854
          %v1902 = vadd.f32 %v1901, %v1856
          %v1903 = vadd.f32 %v1902, %v1858
          %v1904 = vadd.f32 %v1903, %v1860
          %v1905 = vadd.f32 %v1904, %v1862
          %v1906 = vadd.f32 %v1905, %v1864
          %v1907 = vadd.f32 %v1906, %v1866
          %v1908 = vadd.f32 %v1907, %v1868
          %v1909 = vadd.f32 %v1908, %v1870
          %v1910 = vadd.f32 %v1909, %v1872
          %v1911 = vadd.f32 %v1910, %v1874
          %v1912 = vadd.f32 %v1911, %v1876
          %v1913 = vrot.slane %v1912, 4
          %v1914 = vadd.f32 %v1912, %v1913
          %v1915 = vrot.slane %v1914, 2
          %v1916 = vadd.f32 %v1914, %v1915
          %v1917 = vrot.slane %v1916, 1
          %v1918 = vadd.f32 %v1916, %v1917
          %v1921 = vcombine.low %v1897, %v1918
          %v1923 = vunpack.c.l.s4 1966171168
          %v1924 = vunpack.c.0.s8 %v1923
          %v1925 = vlaneseq
          %v1926 = vshrl.u32 %v1925, 7
          %v1927 = vsub.s32 %v1924, %v1926
          %v1928 = vrot.slane %v1921, %v1927
          %v1930 = vunpack.c.l.s4 1966171168
          %v1931 = vunpack.c.0.s8 %v1930
          %v1932 = vlaneseq
          %v1933 = vshrl.u32 %v1932, 7
          %v1934 = vsub.s32 %v1931, %v1933
          %v1935 = vrot.slane %v1928, %v1934
          %v1937 = vadd.f32 %v1844, %v1935
          %1938 = vst.msk [vmem:[#allocation7] sm:$0x3] %vm1842, %v1937
          %s1939 = smul.u32 %s28, 2
          %s1940 = scalar_lea.vmem [#allocation8], %s1939
          %v1941 = vld [vmem:[%s1940] sm:$0x3]
          %v1942 = vmax.f32 %v1699, %v1709
          %v1943 = vmax.f32 %v1703, %v1713
          %v1944 = vmax.f32 %v1942, %v1719
          %v1945 = vmax.f32 %v1943, %v1723
          %v1946 = vmax.f32 %v1944, %v1729
          %v1947 = vmax.f32 %v1945, %v1733
          %v1948 = vmax.f32 %v1946, %v1739
          %v1949 = vmax.f32 %v1947, %v1743
          %v1950 = vmax.f32 %v1948, %v1749
          %v1951 = vmax.f32 %v1949, %v1753
          %v1952 = vmax.f32 %v1950, %v1759
          %v1953 = vmax.f32 %v1951, %v1763
          %v1954 = vmax.f32 %v1952, %v1769
          %v1955 = vmax.f32 %v1953, %v1773
          %v1956 = vmax.f32 %v1954, %v1955
          %v1957 = vrot.slane %v1956, 4
          %v1958 = vmax.f32 %v1956, %v1957
          %v1959 = vrot.slane %v1958, 2
          %v1960 = vmax.f32 %v1958, %v1959
          %v1961 = vrot.slane %v1960, 1
          %v1962 = vmax.f32 %v1960, %v1961
          %v1963 = vmax.f32 %v1701, %v1711
          %v1964 = vmax.f32 %v1705, %v1715
          %v1965 = vmax.f32 %v1963, %v1721
          %v1966 = vmax.f32 %v1964, %v1725
          %v1967 = vmax.f32 %v1965, %v1731
          %v1968 = vmax.f32 %v1966, %v1735
          %v1969 = vmax.f32 %v1967, %v1741
          %v1970 = vmax.f32 %v1968, %v1745
          %v1971 = vmax.f32 %v1969, %v1751
          %v1972 = vmax.f32 %v1970, %v1755
          %v1973 = vmax.f32 %v1971, %v1761
          %v1974 = vmax.f32 %v1972, %v1765
          %v1975 = vmax.f32 %v1973, %v1771
          %v1976 = vmax.f32 %v1974, %v1775
          %v1977 = vmax.f32 %v1975, %v1976
          %v1978 = vrot.slane %v1977, 4
          %v1979 = vmax.f32 %v1977, %v1978
          %v1980 = vrot.slane %v1979, 2
          %v1981 = vmax.f32 %v1979, %v1980
          %v1982 = vrot.slane %v1981, 1
          %v1983 = vmax.f32 %v1981, %v1982
          %v1986 = vcombine.low %v1962, %v1983
          %v1988 = vunpack.c.l.s4 1966171168
          %v1989 = vunpack.c.0.s8 %v1988
          %v1990 = vlaneseq
          %v1991 = vshrl.u32 %v1990, 7
          %v1992 = vsub.s32 %v1989, %v1991
          %v1993 = vrot.slane %v1986, %v1992
          %v1995 = vunpack.c.l.s4 1966171168
          %v1996 = vunpack.c.0.s8 %v1995
          %v1997 = vlaneseq
          %v1998 = vshrl.u32 %v1997, 7
          %v1999 = vsub.s32 %v1996, %v1998
          %v2000 = vrot.slane %v1993, %v1999
          %v2002 = vmax.f32 %v1941, %v2000
          %2003 = vst.msk [vmem:[%s1940] sm:$0x3] %vm1842, %v2002
          %s2004 = scalar_lea.vmem [#allocation9], %s1939
          %v2005 = vld [vmem:[%s2004] sm:$0x3]
          %v2006 = vmin.f32 %v1699, %v1709
          %v2007 = vmin.f32 %v1703, %v1713
          %v2008 = vmin.f32 %v2006, %v1719
          %v2009 = vmin.f32 %v2007, %v1723
          %v2010 = vmin.f32 %v2008, %v1729
          %v2011 = vmin.f32 %v2009, %v1733
          %v2012 = vmin.f32 %v2010, %v1739
          %v2013 = vmin.f32 %v2011, %v1743
          %v2014 = vmin.f32 %v2012, %v1749
          %v2015 = vmin.f32 %v2013, %v1753
          %v2016 = vmin.f32 %v2014, %v1759
          %v2017 = vmin.f32 %v2015, %v1763
          %v2018 = vmin.f32 %v2016, %v1769
          %v2019 = vmin.f32 %v2017, %v1773
          %v2020 = vmin.f32 %v2018, %v2019
          %v2021 = vrot.slane %v2020, 4
          %v2022 = vmin.f32 %v2020, %v2021
          %v2023 = vrot.slane %v2022, 2
          %v2024 = vmin.f32 %v2022, %v2023
          %v2025 = vrot.slane %v2024, 1
          %v2026 = vmin.f32 %v2024, %v2025
          %v2027 = vmin.f32 %v1701, %v1711
          %v2028 = vmin.f32 %v1705, %v1715
          %v2029 = vmin.f32 %v2027, %v1721
          %v2030 = vmin.f32 %v2028, %v1725
          %v2031 = vmin.f32 %v2029, %v1731
          %v2032 = vmin.f32 %v2030, %v1735
          %v2033 = vmin.f32 %v2031, %v1741
          %v2034 = vmin.f32 %v2032, %v1745
          %v2035 = vmin.f32 %v2033, %v1751
          %v2036 = vmin.f32 %v2034, %v1755
          %v2037 = vmin.f32 %v2035, %v1761
          %v2038 = vmin.f32 %v2036, %v1765
          %v2039 = vmin.f32 %v2037, %v1771
          %v2040 = vmin.f32 %v2038, %v1775
          %v2041 = vmin.f32 %v2039, %v2040
          %v2042 = vrot.slane %v2041, 4
          %v2043 = vmin.f32 %v2041, %v2042
          %v2044 = vrot.slane %v2043, 2
          %v2045 = vmin.f32 %v2043, %v2044
          %v2046 = vrot.slane %v2045, 1
          %v2047 = vmin.f32 %v2045, %v2046
          %v2050 = vcombine.low %v2026, %v2047
          %v2052 = vunpack.c.l.s4 1966171168
          %v2053 = vunpack.c.0.s8 %v2052
          %v2054 = vlaneseq
          %v2055 = vshrl.u32 %v2054, 7
          %v2056 = vsub.s32 %v2053, %v2055
          %v2057 = vrot.slane %v2050, %v2056
          %v2059 = vunpack.c.l.s4 1966171168
          %v2060 = vunpack.c.0.s8 %v2059
          %v2061 = vlaneseq
          %v2062 = vshrl.u32 %v2061, 7
          %v2063 = vsub.s32 %v2060, %v2062
          %v2064 = vrot.slane %v2057, %v2063
          %v2066 = vmin.f32 %v2005, %v2064
          %2067 = vst.msk [vmem:[%s2004] sm:$0x3] %vm1842, %v2066
          %p2068 = scmp.eq.s32.totalorder %s28, 1
          %p2069 = scmp.eq.s32.totalorder %s29, 3
          %p2070 = pnand %p2068, %p2069
          %p2071 = pneg %p2070
          // Predicated region
          $region77: #{pointnet_feat_two_stream.1} parent=75 // pred_check
            _
          $region78: #{pointnet_feat_two_stream.1} parent=75 // pred_check_branch
            %2073 = sbr.rel (%p2070) target = $region80
          $region79: #{pointnet_feat_two_stream.1} parent=75 // pred_region
            %v2074 = vld [vmem:[#allocation6] sm:$0x3]
            %v2075 = vmul.f32 %v2074, 0.0009765625
            %v2076 = vld [vmem:[#allocation7] sm:$0x3]
            %v2077 = vmul.f32 %v2076, 0.0009765625
            %v2078 = vmul.f32 %v2075, %v2075
            %v2079 = vsub.f32 %v2077, %v2078
            %v2080 = vmax.f32 %v2079, 0.0
            %v2081 = vadd.f32 %v2080, 1e-05
            %v2082 = vrsqrt.pop %v2081
            %v2083 = vld [vmem:[%s8] sm:$0x3]
            %v2084 = vmul.f32 %v2082, %v2083
            %v2085 = vld [vmem:[%s9] sm:$0x3]
            %v2086 = vmul.f32 %v2075, %v2084
            %v2087 = vsub.f32 %v2085, %v2086
            %vm2088 = vcmp.ge.f32.partialorder %v2084, 0.0
            %v2089 = vld [vmem:[#allocation8] sm:$0x3]
            %v2090 = vld [vmem:[#allocation9] sm:$0x3]
            %v2091 = vsel %vm2088, %v2089, %v2090
            %s2092 = scalar_lea.vmem [#allocation8], 2
            %v2093 = vld [vmem:[%s2092] sm:$0x3]
            %s2094 = scalar_lea.vmem [#allocation9], 2
            %v2095 = vld [vmem:[%s2094] sm:$0x3]
            %v2096 = vsel %vm2088, %v2093, %v2095
            %v2098 = vlaneseq
            %v2099 = vshrl.u32 %v2098, 7
            %v2100 = vsub.s32 0, %v2099
            %v2101 = vrot.slane %v2091, %v2100
            %v2102 = vlaneseq
            %v2103 = vshrl.u32 %v2102, 7
            %v2104 = vsub.s32 1, %v2103
            %v2105 = vrot.slane %v2091, %v2104
            %v2109 = vlaneseq
            %v2110 = vshrl.u32 %v2109, 7
            %v2111 = vsub.s32 0, %v2110
            %v2112 = vrot.slane %v2096, %v2111
            %v2113 = vlaneseq
            %v2114 = vshrl.u32 %v2113, 7
            %v2115 = vsub.s32 1, %v2114
            %v2116 = vrot.slane %v2096, %v2115
            %vm2119 = vcmask 1040384
            %v2120 = vsel %vm2119, %v2101, %v2112
            %v2121 = vsel %vm2119, %v2105, %v2116
            %v2123 = vlaneseq
            %v2124 = vshrl.u32 %v2123, 7
            %v2125 = vsub.s32 0, %v2124
            %v2126 = vrot.slane %v2084, %v2125
            %v2127 = vlaneseq
            %v2128 = vshrl.u32 %v2127, 7
            %v2129 = vsub.s32 1, %v2128
            %v2130 = vrot.slane %v2084, %v2129
            %v2133 = vmul.f32 %v2120, %v2126
            %v2134 = vmul.f32 %v2121, %v2130
            %v2136 = vlaneseq
            %v2137 = vshrl.u32 %v2136, 7
            %v2138 = vsub.s32 0, %v2137
            %v2139 = vrot.slane %v2087, %v2138
            %v2140 = vlaneseq
            %v2141 = vshrl.u32 %v2140, 7
            %v2142 = vsub.s32 1, %v2141
            %v2143 = vrot.slane %v2087, %v2142
            %v2146 = vadd.f32 %v2133, %v2139
            %v2147 = vadd.f32 %v2134, %v2143
            %v2150 = vcombine.low %v2146, %v2147
            %v2152 = vunpack.c.l.s4 1983009808
            %v2153 = vunpack.c.0.s8 %v2152
            %v2154 = vlaneseq
            %v2155 = vshrl.u32 %v2154, 7
            %v2156 = vsub.s32 %v2153, %v2155
            %v2157 = vrot.slane %v2150, %v2156
            %2159 = vst [vmem:[#allocation10] sm:$0xf] %v2157
          $region80: #{pointnet_feat_two_stream.1} parent=75 // pred_fallthru
            _
        $region76: #{pointnet_feat_two_stream.1} parent=59 // pred_fallthru
          _
        // Predicated region
        $region81: #{pointnet_feat_two_stream.1} parent=59 // pred_check
          %p2160 = pneg %p271
        $region82: #{pointnet_feat_two_stream.1} parent=59 // pred_check_branch
          %2162 = sbr.rel (%p2160) target = $region84
        $region83: #{pointnet_feat_two_stream.1} parent=59 // pred_region
          %s2164 = ssub.s32 64, 64
          %2165 = vsyncadd [#allocation11], %s2164
          %s2167 = sshll.u32 [#allocation10], 4
          %s2168 = int_to_ptr.vmem [resolvable:$true] %s2167
          %2170 = dma.vmem_to_hbm [thread:$0]  %s2168, 64, %s10, [#allocation11]
        $region84: #{pointnet_feat_two_stream.1} parent=59 // pred_fallthru
          _
        // Predicated region
        $region85: #{pointnet_feat_two_stream.1} parent=59 // pred_check
          %p2171 = pneg %p271
        $region86: #{pointnet_feat_two_stream.1} parent=59 // pred_check_branch
          %2173 = sbr.rel (%p2171) target = $region88
        $region87: #{pointnet_feat_two_stream.1} parent=59 // pred_region
          %2174 = dma.done [#allocation11], 64
        $region88: #{pointnet_feat_two_stream.1} parent=59 // pred_fallthru
          _
      $region60: #{pointnet_feat_two_stream.1} parent=5 // pred_fallthru
        _
      %p2175 = scmp.le.s32.totalorder 2, %s17
      // Predicated region
      $region89: #{pointnet_feat_two_stream.1} parent=5 // pred_check
        %p2176 = pneg %p2175
      $region90: #{pointnet_feat_two_stream.1} parent=5 // pred_check_branch
        %2178 = sbr.rel (%p2176) target = $region92
      $region91: #{pointnet_feat_two_stream.1} parent=5 // pred_region
        %s2179 = ssub.s32 %s17, 2
      $region92: #{pointnet_feat_two_stream.1} parent=5 // pred_fallthru
        _
    $region6: #{pointnet_feat_two_stream.1} parent=1 // loop_footer
      %s21 = sadd.s32 1, %s17
    $region7: #{pointnet_feat_two_stream.1} parent=1 // loop_footer_branch
      %16 = sbr.rel target = $region3
    $region8: #{pointnet_feat_two_stream.1} parent=1 // loop_exit
      _
    %2180 = vsyncpa [#allocation11], 1
    %s2181 = scalar_lea.sflag [#allocation11], 1
    %2182 = vsyncpa %s2181, 1

</llo_original>
